<compile_context>
chip_gen: v7x
topology: tpu7x:2x2x1
jax: 0.10.0
libtpu: 0.0.40
codegen_flags: <defaults>
</compile_context>

<pallas_src>
import functools

import jax
import jax.numpy as jnp
from jax import lax
from jax.experimental import pallas as pl
from jax.experimental.pallas import tpu as pltpu

EPS = 1e-5  # nn.BatchNorm2d default eps


# ----------------------------------------------------------------------------
# Pallas kernel: fused BN+ReLU + 3x3 conv (+ shortcut / residual) (+ stats)
# ----------------------------------------------------------------------------
def _fused_conv3x3_kernel(x_ref, s_ref, t_ref, w_ref, b_ref, *rest,
                          W, TH, Cin, Cout, n_tiles, n_res, emit_stats,
                          use_xlu_roll):
    """One TH-row output tile of: conv3x3(relu(x*scale+shift)) + bias
       [+ res @ scw (fused 1x1 shortcut) | + res] [+ per-tile BN partials].

    The conv input block is the full flattened (H*W, Cin) image of one batch
    element (resident across the row-tile grid axis, DMA'd once per batch
    element); outputs / residuals are TH-row tiles.
    """
    pos = 0
    res_ref = scw_ref = stats_ref = None
    if n_res:
        res_ref = rest[pos]; pos += 1
    if n_res == 2:
        scw_ref = rest[pos]; pos += 1
    o_ref = rest[pos]; pos += 1
    if emit_stats:
        stats_ref = rest[pos]; pos += 1
    patch_ref = rest[pos]

    TW = TH * W
    HW = n_tiles * TW
    t = pl.program_id(1)

    scale = s_ref[...]          # (1, Cin) f32
    shift = t_ref[...]          # (1, Cin) f32

    def bn_relu(rows):          # rows: (n, Cin) f32
        return jnp.maximum(rows * scale + shift, 0.0)

    # Interior rows of this tile plus a one-image-row halo on each side,
    # sliced from the resident full-image block. Starts are W-aligned.
    row0 = pl.multiple_of(t * TW, TW)
    interior = bn_relu(x_ref[0, pl.ds(row0, TW), :])

    top_start = pl.multiple_of(jnp.maximum(row0 - W, 0), W)
    bot_start = pl.multiple_of(jnp.minimum(row0 + TW, HW - W), W)
    top_mask = (t > 0).astype(jnp.float32)
    bot_mask = (t < n_tiles - 1).astype(jnp.float32)
    top = bn_relu(x_ref[0, pl.ds(top_start, W), :]) * top_mask
    bot = bn_relu(x_ref[0, pl.ds(bot_start, W), :]) * bot_mask

    xa = jnp.concatenate([top, interior, bot], axis=0)   # ((TH+2)*W, Cin) f32
    npad = (TH + 2) * W

    # kw in {0,1,2} taps of the (implicitly W-zero-padded) rows, realised as
    # +-1 rotations along the flattened sublane axis + edge-column masking.
    if use_xlu_roll:
        roll = lambda v, s: pltpu.roll(v, s, 0)          # XLU rotate (cheap slot)
    else:
        roll = lambda v, s: jnp.roll(v, s, axis=0)       # portable fallback
    # Narrow (npad, 1) column-index mask, broadcast inside the selects.
    colmod = lax.broadcasted_iota(jnp.int32, (npad, 1), 0) % W
    xa_l = jnp.where(colmod == 0, 0.0, roll(xa, 1))             # tap kw = 0
    xa_r = jnp.where(colmod == W - 1, 0.0, roll(xa, npad - 1))  # tap kw = 2

    shifted = (xa_l.astype(jnp.bfloat16),
               xa.astype(jnp.bfloat16),
               xa_r.astype(jnp.bfloat16))

    # im2col: write the 9 shifted windows into one (TW, 9*Cin) bf16 VMEM patch
    # buffer (W-aligned row slices, static lane-offset column slices), then do
    # a single big-K MXU matmul with f32 accumulation.
    for kh in range(3):
        for kw in range(3):
            tap = kh * 3 + kw
            patch_ref[:, tap * Cin:(tap + 1) * Cin] = (
                shifted[kw][kh * W:kh * W + TW, :])

    acc = jnp.dot(patch_ref[...], w_ref[...],
                  preferred_element_type=jnp.float32)      # (TW, Cout) f32
    acc = acc + b_ref[...]                                 # + bias (1, Cout)

    if n_res == 2:      # fused 1x1 shortcut conv + residual add
        acc = acc + jnp.dot(res_ref[0].astype(jnp.bfloat16), scw_ref[...],
                            preferred_element_type=jnp.float32)
    elif n_res == 1:    # identity residual
        acc = acc + res_ref[0].astype(jnp.float32)

    o_ref[0] = acc.astype(o_ref.dtype)

    if emit_stats:
        # Per-tile channel sum / sum-of-squares so the next BatchNorm's batch
        # statistics do not need to re-read this output from HBM.
        ssum = jnp.sum(acc, axis=0, keepdims=True)
        ssq = jnp.sum(acc * acc, axis=0, keepdims=True)
        stats_ref[0, 0] = jnp.concatenate([ssum, ssq], axis=0)


def fused_bn_relu_conv3x3(x_flat, scale, shift, w9, bias, *, W, row_tile,
                          residual=None, res_w=None, emit_stats=False):
    """relu(x*scale+shift) -> conv3x3(pad=1) -> +bias
       [-> + residual | + residual @ res_w]  on flattened NHWC (B, H*W, C)."""
    B, HW, Cin = x_flat.shape
    Cout = w9.shape[-1]
    assert HW % W == 0
    H = HW // W
    TH = row_tile
    assert H % TH == 0, (H, TH)
    TW = TH * W
    n_tiles = H // TH
    assert TW % 8 == 0 or n_tiles == 1, (TW, n_tiles)

    s2 = scale.reshape(1, Cin).astype(jnp.float32)
    t2 = shift.reshape(1, Cin).astype(jnp.float32)
    b2 = bias.reshape(1, Cout).astype(jnp.float32)

    n_res = 0 if residual is None else (2 if res_w is not None else 1)

    in_specs = [
        # Full flattened image per batch element; the index_map ignores the
        # row-tile axis so it is DMA'd once per batch element and reused.
        # TODO(synk): for very large spatial sizes, bound the input footprint
        # too via a manual halo DMA (memory_space=pl.ANY + make_async_copy).
        pl.BlockSpec((1, HW, Cin), lambda b, t: (b, 0, 0)),
        pl.BlockSpec((1, Cin), lambda b, t: (0, 0)),
        pl.BlockSpec((1, Cin), lambda b, t: (0, 0)),
        pl.BlockSpec((9 * Cin, Cout), lambda b, t: (0, 0)),
        pl.BlockSpec((1, Cout), lambda b, t: (0, 0)),
    ]
    args = [x_flat, s2, t2, w9.astype(jnp.bfloat16), b2]
    if n_res:
        c_res = residual.shape[-1]
        in_specs.append(pl.BlockSpec((1, TW, c_res), lambda b, t: (b, t, 0)))
        args.append(residual)
    if n_res == 2:
        in_specs.append(pl.BlockSpec(res_w.shape, lambda b, t: (0, 0)))
        args.append(res_w.astype(jnp.bfloat16))

    out_shape = [jax.ShapeDtypeStruct((B, HW, Cout), x_flat.dtype)]
    out_specs = [pl.BlockSpec((1, TW, Cout), lambda b, t: (b, t, 0))]
    if emit_stats:
        out_shape.append(jax.ShapeDtypeStruct((B, n_tiles, 2, Cout), jnp.float32))
        out_specs.append(pl.BlockSpec((1, 1, 2, Cout), lambda b, t: (b, t, 0, 0)))

    def build(use_xlu_roll):
        kern = functools.partial(
            _fused_conv3x3_kernel, W=W, TH=TH, Cin=Cin, Cout=Cout,
            n_tiles=n_tiles, n_res=n_res, emit_stats=emit_stats,
            use_xlu_roll=use_xlu_roll)
        return pl.pallas_call(
            kern,
            grid=(B, n_tiles),
            in_specs=in_specs,
            out_specs=out_specs if emit_stats else out_specs[0],
            out_shape=out_shape if emit_stats else out_shape[0],
            scratch_shapes=[pltpu.VMEM((TW, 9 * Cin), jnp.bfloat16)],
            compiler_params=pltpu.CompilerParams(
                # Both grid axes write disjoint output blocks -> parallel, so
                # v7x's two TensorCores can split them (neutral on v5e/v6e).
                dimension_semantics=("parallel", "parallel"),
                # Explicit scoped-VMEM budget with double-buffering headroom,
                # within v7x's 64 MiB/TC physical VMEM.
                vmem_limit_bytes=48 * 1024 * 1024),
        )

    try:
        return build(True)(*args)
    except Exception:  # pragma: no cover - toolchain-dependent roll lowering
        return build(False)(*args)


# ----------------------------------------------------------------------------
# Glue (plain JAX)
# ----------------------------------------------------------------------------
def upsample2x_nearest(x_nhwc):
    x = jnp.repeat(x_nhwc, 2, axis=1)
    return jnp.repeat(x, 2, axis=2)


def batchnorm_affine(x_nhwc, gamma, beta):
    # Training-mode BatchNorm2d: batch statistics over (N, H, W), biased var,
    # folded into a per-channel scale/shift consumed by the Pallas kernels.
    mean = jnp.mean(x_nhwc, axis=(0, 1, 2))
    var = jnp.mean(jnp.square(x_nhwc - mean), axis=(0, 1, 2))
    scale = gamma / jnp.sqrt(var + EPS)
    shift = beta - mean * scale
    return scale, shift


def _auto_row_tile(H, W, Cin, Cout, budget_bytes=4 << 20):
    """Largest row tile whose per-step working set fits a small VMEM budget."""
    candidates = [th for th in range(1, H + 1)
                  if H % th == 0 and ((th * W) % 8 == 0 or th == H)]
    for th in sorted(candidates, reverse=True):
        work = ((th + 2) * W * Cin * 4          # padded activation rows (f32)
                + th * W * 9 * Cin * 2          # im2col patch (bf16)
                + 2 * th * W * Cout * 4)        # accumulator + output tile
        if work <= budget_bytes:
            return th
    return candidates[0] if candidates else H


def generator_block(x_nchw, params, *, upsample=False, row_tile=None):
    """Pallas implementation of GeneratorBlock.forward (NCHW in / NCHW out)."""
    B, Cin, H, W = x_nchw.shape
    x = jnp.transpose(x_nchw, (0, 2, 3, 1))             # NCHW -> NHWC

    # bn1 statistics on the (small) pre-upsample activation; BN+ReLU are
    # pointwise so they commute with nearest upsampling and are applied to
    # the upsampled input inside the conv1 kernel as a folded scale/shift.
    s1, t1 = batchnorm_affine(x, params["bn1_g"], params["bn1_b"])

    if upsample:
        # TODO(synk): fuse the nearest 2x upsample into the conv kernels (needs
        # a sublane interleave / strided VMEM store) so the 4x-larger tensor is
        # never materialised in HBM.
        x = upsample2x_nearest(x)
    _, H2, W2, _ = x.shape
    x_flat = x.reshape(B, H2 * W2, Cin)                  # lane axis = channels

    TH = row_tile if row_tile is not None else _auto_row_tile(
        H2, W2, Cin, params["conv2_w"].shape[-1])

    # ---- conv1: fused BN1+ReLU + 3x3 conv + bias, emits bn2 partial stats ----
    w1 = params["conv1_w"].reshape(9 * Cin, Cin)
    h_flat, h_stats = fused_bn_relu_conv3x3(
        x_flat, s1, t1, w1, params["conv1_b"], W=W2, row_tile=TH,
        emit_stats=True)

    # Finish bn2 batch statistics from the in-kernel partial sums.
    count = B * H2 * W2
    tot = jnp.sum(h_stats, axis=(0, 1))                  # (2, Cin)
    mean2 = tot[0] / count
    var2 = jnp.maximum(tot[1] / count - mean2 * mean2, 0.0)
    s2 = params["bn2_g"] / jnp.sqrt(var2 + EPS)
    t2 = params["bn2_b"] - mean2 * s2

    # ---- conv2: fused BN2+ReLU + 3x3 conv + bias + 1x1 shortcut + residual ----
    Cout = params["conv2_w"].shape[-1]
    w2 = params["conv2_w"].reshape(9 * Cin, Cout)
    if params["shortcut_w"] is not None:
        bias2 = params["conv2_b"] + params["shortcut_b"]  # fold both biases
        res_w = params["shortcut_w"]
    else:
        bias2 = params["conv2_b"]
        res_w = None
    out_flat = fused_bn_relu_conv3x3(
        h_flat, s2, t2, w2, bias2, W=W2, row_tile=TH,
        residual=x_flat, res_w=res_w)

    out = out_flat.reshape(B, H2, W2, Cout)
    return jnp.transpose(out, (0, 3, 1, 2))              # NHWC -> NCHW


# ----------------------------------------------------------------------------
# Pure-JAX reference (correctness check)
# ----------------------------------------------------------------------------
def _conv_ref(x, w, b, pad, mxu_dtype=None):
    if mxu_dtype is not None:
        x = x.astype(mxu_dtype)
        w = w.astype(mxu_dtype)
    y = jax.lax.conv_general_dilated(
        x, w, (1, 1), [(pad, pad), (pad, pad)],
        dimension_numbers=("NHWC", "HWIO", "NHWC"),
        preferred_element_type=jnp.float32)
    return y + b[None, None, None, :]


def generator_block_ref(x_nchw, params, *, upsample=False, mxu_dtype=None):
    x = jnp.transpose(x_nchw, (0, 2, 3, 1))
    shortcut = upsample2x_nearest(x) if upsample else x
    if params["shortcut_w"] is not None:
        shortcut = _conv_ref(shortcut, params["shortcut_w"][None, None],
                             params["shortcut_b"], 0, mxu_dtype)
    s1, t1 = batchnorm_affine(x, params["bn1_g"], params["bn1_b"])
    h = jnp.maximum(x * s1 + t1, 0.0)
    if upsample:
        h = upsample2x_nearest(h)
    h = _conv_ref(h, params["conv1_w"], params["conv1_b"], 1, mxu_dtype)
    s2, t2 = batchnorm_affine(h, params["bn2_g"], params["bn2_b"])
    h2 = jnp.maximum(h * s2 + t2, 0.0)
    h2 = _conv_ref(h2, params["conv2_w"], params["conv2_b"], 1, mxu_dtype)
    out = h2 + shortcut
    return jnp.transpose(out, (0, 3, 1, 2))


# ----------------------------------------------------------------------------
# Demo
# ----------------------------------------------------------------------------
def _make_params(key, cin, cout):
    ks = jax.random.split(key, 10)
    p = {
        "bn1_g": 1.0 + 0.1 * jax.random.normal(ks[0], (cin,), jnp.float32),
        "bn1_b": 0.1 * jax.random.normal(ks[1], (cin,), jnp.float32),
        "conv1_w": 0.1 * jax.random.normal(ks[2], (3, 3, cin, cin), jnp.float32),
        "conv1_b": 0.05 * jax.random.normal(ks[3], (cin,), jnp.float32),
        "bn2_g": 1.0 + 0.1 * jax.random.normal(ks[4], (cin,), jnp.float32),
        "bn2_b": 0.1 * jax.random.normal(ks[5], (cin,), jnp.float32),
        "conv2_w": 0.1 * jax.random.normal(ks[6], (3, 3, cin, cout), jnp.float32),
        "conv2_b": 0.05 * jax.random.normal(ks[7], (cout,), jnp.float32),
    }
    if cin != cout:
        p["shortcut_w"] = 0.1 * jax.random.normal(ks[8], (cin, cout), jnp.float32)
        p["shortcut_b"] = 0.05 * jax.random.normal(ks[9], (cout,), jnp.float32)
    else:
        p["shortcut_w"] = None
        p["shortcut_b"] = None
    return p


def _check(x, params, upsample, row_tile):
    out = generator_block(x, params, upsample=upsample, row_tile=row_tile)
    out = jax.block_until_ready(out)
    B, Cin, H, W = x.shape
    Cout = params["conv2_w"].shape[-1]
    sc = 2 if upsample else 1
    assert out.shape == (B, Cout, sc * H, sc * W), out.shape

    # Matched-precision reference (bf16 MXU inputs, f32 accumulation) should
    # agree very tightly; the pure-f32 reference bounds the bf16 rounding.
    ref_bf16 = generator_block_ref(x, params, upsample=upsample,
                                   mxu_dtype=jnp.bfloat16)
    ref_f32 = generator_block_ref(x, params, upsample=upsample)
    err_matched = float(jnp.max(jnp.abs(out - ref_bf16)))
    err_f32 = float(jnp.max(jnp.abs(out - ref_f32)))
    assert err_matched < 1e-2, f"matched-precision max abs err {err_matched}"
    assert err_f32 < 1e-1, f"f32 reference max abs err {err_f32}"


if __name__ == "__main__":
    key = jax.random.PRNGKey(0)
    k1, k2, k3, k4 = jax.random.split(key, 4)

    # Case 1: upsample + channel-changing shortcut conv (4 -> 8 channels,
    # 8x8 -> 16x16); row_tile=4 gives 4 row tiles and exercises the halo /
    # edge-masking logic plus the fused 1x1-shortcut path.
    B, Cin, Cout, H, W = 2, 4, 8, 8, 8
    params1 = _make_params(k1, Cin, Cout)
    x1 = jax.random.normal(k2, (B, Cin, H, W), jnp.float32)
    _check(x1, params1, upsample=True, row_tile=4)

    # Case 2: no upsample, identity shortcut (Cin == Cout), 16x16 spatial.
    params2 = _make_params(k3, Cin, Cin)
    x2 = jax.random.normal(k4, (B, Cin, 16, 16), jnp.float32)
    _check(x2, params2, upsample=False, row_tile=4)

    print("KERNEL_OK")
</pallas_src>

<mosaic_0001>
module attributes {stable_mosaic.version = 11 : i64} {
  func.func @_fused_conv3x3_kernel(%arg0: i32, %arg1: i32, %arg2: memref<1x256x4xf32, #tpu.memory_space<vmem>>, %arg3: memref<1x4xf32, #tpu.memory_space<vmem>>, %arg4: memref<1x4xf32, #tpu.memory_space<vmem>>, %arg5: memref<36x4xbf16, #tpu.memory_space<vmem>>, %arg6: memref<1x4xf32, #tpu.memory_space<vmem>>, %arg7: memref<1x64x4xf32, #tpu.memory_space<vmem>>, %arg8: memref<1x1x2x4xf32, #tpu.memory_space<vmem>>, %arg9: memref<64x36xbf16, #tpu.memory_space<vmem>>) attributes {dimension_semantics = [#tpu.dimension_semantics<parallel>, #tpu.dimension_semantics<parallel>], iteration_bounds = array<i64: 2, 4>, scalar_prefetch = 0 : i64, scratch_operands = 1 : i64, tpu.core_type = #tpu.core_type<tc>, window_params = [{transform_indices = @transform_0, window_bounds = array<i64: 1, 256, 4>}, {pipeline_mode = #tpu.pipeline_mode<synchronous>, transform_indices = @transform_1, window_bounds = array<i64: 1, 4>}, {pipeline_mode = #tpu.pipeline_mode<synchronous>, transform_indices = @transform_2, window_bounds = array<i64: 1, 4>}, {pipeline_mode = #tpu.pipeline_mode<synchronous>, transform_indices = @transform_3, window_bounds = array<i64: 36, 4>}, {pipeline_mode = #tpu.pipeline_mode<synchronous>, transform_indices = @transform_4, window_bounds = array<i64: 1, 4>}, {transform_indices = @transform_5, window_bounds = array<i64: 1, 64, 4>}, {transform_indices = @transform_6, window_bounds = array<i64: 1, 1, 2, 4>}]} {
    %c0 = arith.constant 0 : index
    %c0_0 = arith.constant 0 : index
    %0 = vector.load %arg3[%c0, %c0_0] : memref<1x4xf32, #tpu.memory_space<vmem>>, vector<1x4xf32>
    %c0_1 = arith.constant 0 : index
    %c0_2 = arith.constant 0 : index
    %1 = vector.load %arg4[%c0_1, %c0_2] : memref<1x4xf32, #tpu.memory_space<vmem>>, vector<1x4xf32>
    %c64_i32 = arith.constant 64 : i32
    %2 = arith.muli %arg1, %c64_i32 : i32
    %3 = tpu.assume_multiple %2, 64 : i32
    %c0_3 = arith.constant 0 : index
    %4 = arith.index_cast %3 : i32 to index
    %c0_4 = arith.constant 0 : index
    %5 = vector.load %arg2[%c0_3, %4, %c0_4] : memref<1x256x4xf32, #tpu.memory_space<vmem>>, vector<1x64x4xf32>
    %6 = vector.shape_cast %5 : vector<1x64x4xf32> to vector<64x4xf32>
    %7 = vector.broadcast %0 : vector<1x4xf32> to vector<64x4xf32>
    %8 = arith.mulf %6, %7 : vector<64x4xf32>
    %9 = vector.broadcast %1 : vector<1x4xf32> to vector<64x4xf32>
    %10 = arith.addf %8, %9 : vector<64x4xf32>
    %cst = arith.constant 0.000000e+00 : f32
    %11 = vector.broadcast %cst : f32 to vector<64x4xf32>
    %12 = arith.maximumf %10, %11 : vector<64x4xf32>
    %c16_i32 = arith.constant 16 : i32
    %13 = arith.subi %3, %c16_i32 : i32
    %c0_i32 = arith.constant 0 : i32
    %14 = arith.maxsi %13, %c0_i32 : i32
    %15 = tpu.assume_multiple %14, 16 : i32
    %c64_i32_5 = arith.constant 64 : i32
    %16 = arith.addi %3, %c64_i32_5 : i32
    %c240_i32 = arith.constant 240 : i32
    %17 = arith.minsi %16, %c240_i32 : i32
    %18 = tpu.assume_multiple %17, 16 : i32
    %c0_i32_6 = arith.constant 0 : i32
    %19 = arith.cmpi sgt, %arg1, %c0_i32_6 : i32
    %20 = arith.extui %19 : i1 to i32
    %21 = arith.sitofp %20 : i32 to f32
    %c3_i32 = arith.constant 3 : i32
    %22 = arith.cmpi slt, %arg1, %c3_i32 : i32
    %23 = arith.extui %22 : i1 to i32
    %24 = arith.sitofp %23 : i32 to f32
    %c0_7 = arith.constant 0 : index
    %25 = arith.index_cast %15 : i32 to index
    %c0_8 = arith.constant 0 : index
    %26 = vector.load %arg2[%c0_7, %25, %c0_8] : memref<1x256x4xf32, #tpu.memory_space<vmem>>, vector<1x16x4xf32>
    %27 = vector.shape_cast %26 : vector<1x16x4xf32> to vector<16x4xf32>
    %28 = vector.broadcast %0 : vector<1x4xf32> to vector<16x4xf32>
    %29 = arith.mulf %27, %28 : vector<16x4xf32>
    %30 = vector.broadcast %1 : vector<1x4xf32> to vector<16x4xf32>
    %31 = arith.addf %29, %30 : vector<16x4xf32>
    %cst_9 = arith.constant 0.000000e+00 : f32
    %32 = vector.broadcast %cst_9 : f32 to vector<16x4xf32>
    %33 = arith.maximumf %31, %32 : vector<16x4xf32>
    %34 = vector.broadcast %21 : f32 to vector<16x4xf32>
    %35 = arith.mulf %33, %34 : vector<16x4xf32>
    %c0_10 = arith.constant 0 : index
    %36 = arith.index_cast %18 : i32 to index
    %c0_11 = arith.constant 0 : index
    %37 = vector.load %arg2[%c0_10, %36, %c0_11] : memref<1x256x4xf32, #tpu.memory_space<vmem>>, vector<1x16x4xf32>
    %38 = vector.shape_cast %37 : vector<1x16x4xf32> to vector<16x4xf32>
    %39 = vector.broadcast %0 : vector<1x4xf32> to vector<16x4xf32>
    %40 = arith.mulf %38, %39 : vector<16x4xf32>
    %41 = vector.broadcast %1 : vector<1x4xf32> to vector<16x4xf32>
    %42 = arith.addf %40, %41 : vector<16x4xf32>
    %cst_12 = arith.constant 0.000000e+00 : f32
    %43 = vector.broadcast %cst_12 : f32 to vector<16x4xf32>
    %44 = arith.maximumf %42, %43 : vector<16x4xf32>
    %45 = vector.broadcast %24 : f32 to vector<16x4xf32>
    %46 = arith.mulf %44, %45 : vector<16x4xf32>
    %47 = tpu.concatenate %35, %12, %46 in 0 : vector<16x4xf32>, vector<64x4xf32>, vector<16x4xf32> -> vector<96x4xf32>
    %48 = tpu.iota {dimensions = array<i32: 0>} : vector<96x1xi32>
    %c16_i32_13 = arith.constant 16 : i32
    %c0_i32_14 = arith.constant 0 : i32
    %49 = arith.cmpi eq, %c16_i32_13, %c0_i32_14 : i32
    %c1_i32 = arith.constant 1 : i32
    %50 = arith.select %49, %c1_i32, %c16_i32_13 : i32
    %51 = vector.broadcast %50 : i32 to vector<96x1xi32>
    %52 = arith.remsi %48, %51 : vector<96x1xi32>
    %c0_i32_15 = arith.constant 0 : i32
    %53 = vector.broadcast %c0_i32_15 : i32 to vector<96x1xi32>
    %54 = arith.cmpi ne, %52, %53 : vector<96x1xi32>
    %c0_i32_16 = arith.constant 0 : i32
    %55 = vector.broadcast %c0_i32_16 : i32 to vector<96x1xi32>
    %56 = arith.cmpi slt, %52, %55 : vector<96x1xi32>
    %c0_i32_17 = arith.constant 0 : i32
    %57 = arith.cmpi slt, %50, %c0_i32_17 : i32
    %58 = vector.broadcast %57 : i1 to vector<96x1xi1>
    %59 = vector.broadcast %58 : vector<96x1xi1> to vector<96x1xi1>
    %60 = arith.xori %56, %59 : vector<96x1xi1>
    %61 = arith.andi %60, %54 : vector<96x1xi1>
    %62 = vector.broadcast %50 : i32 to vector<96x1xi32>
    %63 = arith.addi %52, %62 : vector<96x1xi32>
    %64 = arith.select %61, %63, %52 : vector<96x1xi1>, vector<96x1xi32>
    %c0_i32_18 = arith.constant 0 : i32
    %65 = vector.broadcast %c0_i32_18 : i32 to vector<96x1xi32>
    %66 = arith.cmpi eq, %64, %65 : vector<96x1xi32>
    %c1_i32_19 = arith.constant 1 : i32
    %67 = tpu.dynamic_rotate %47 by %c1_i32_19 dim 0 : vector<96x4xf32>, i32 -> vector<96x4xf32>
    %cst_20 = arith.constant 0.000000e+00 : f32
    %68 = vector.shape_cast %66 : vector<96x1xi1> to vector<96x1xi1>
    %69 = vector.broadcast %68 : vector<96x1xi1> to vector<96x4xi1>
    %70 = vector.broadcast %cst_20 : f32 to vector<96x4xf32>
    %71 = arith.select %69, %70, %67 : vector<96x4xi1>, vector<96x4xf32>
    %c15_i32 = arith.constant 15 : i32
    %72 = vector.broadcast %c15_i32 : i32 to vector<96x1xi32>
    %73 = arith.cmpi eq, %64, %72 : vector<96x1xi32>
    %c95_i32 = arith.constant 95 : i32
    %74 = tpu.dynamic_rotate %47 by %c95_i32 dim 0 : vector<96x4xf32>, i32 -> vector<96x4xf32>
    %cst_21 = arith.constant 0.000000e+00 : f32
    %75 = vector.shape_cast %73 : vector<96x1xi1> to vector<96x1xi1>
    %76 = vector.broadcast %75 : vector<96x1xi1> to vector<96x4xi1>
    %77 = vector.broadcast %cst_21 : f32 to vector<96x4xf32>
    %78 = arith.select %76, %77, %74 : vector<96x4xi1>, vector<96x4xf32>
    %79 = arith.truncf %71 : vector<96x4xf32> to vector<96x4xbf16>
    %80 = arith.truncf %47 : vector<96x4xf32> to vector<96x4xbf16>
    %81 = arith.truncf %78 : vector<96x4xf32> to vector<96x4xbf16>
    %82 = vector.extract_strided_slice %79 {offsets = [0, 0], sizes = [64, 4], strides = [1, 1]} : vector<96x4xbf16> to vector<64x4xbf16>
    %c0_22 = arith.constant 0 : index
    %c0_23 = arith.constant 0 : index
    %83 = vector.load %arg9[%c0_22, %c0_23] : memref<64x36xbf16, #tpu.memory_space<vmem>>, vector<64x4xbf16>
    tpu.vector_store %arg9[%c0_22, %c0_23], %82 {strides = array<i32>} : memref<64x36xbf16, #tpu.memory_space<vmem>>, vector<64x4xbf16>,
    %84 = vector.extract_strided_slice %80 {offsets = [0, 0], sizes = [64, 4], strides = [1, 1]} : vector<96x4xbf16> to vector<64x4xbf16>
    %c0_24 = arith.constant 0 : index
    %c4 = arith.constant 4 : index
    %85 = vector.load %arg9[%c0_24, %c4] : memref<64x36xbf16, #tpu.memory_space<vmem>>, vector<64x4xbf16>
    tpu.vector_store %arg9[%c0_24, %c4], %84 {strides = array<i32>} : memref<64x36xbf16, #tpu.memory_space<vmem>>, vector<64x4xbf16>,
    %86 = vector.extract_strided_slice %81 {offsets = [0, 0], sizes = [64, 4], strides = [1, 1]} : vector<96x4xbf16> to vector<64x4xbf16>
    %c0_25 = arith.constant 0 : index
    %c8 = arith.constant 8 : index
    %87 = vector.load %arg9[%c0_25, %c8] : memref<64x36xbf16, #tpu.memory_space<vmem>>, vector<64x4xbf16>
    tpu.vector_store %arg9[%c0_25, %c8], %86 {strides = array<i32>} : memref<64x36xbf16, #tpu.memory_space<vmem>>, vector<64x4xbf16>,
    %88 = vector.extract_strided_slice %79 {offsets = [16, 0], sizes = [64, 4], strides = [1, 1]} : vector<96x4xbf16> to vector<64x4xbf16>
    %c0_26 = arith.constant 0 : index
    %c12 = arith.constant 12 : index
    %89 = vector.load %arg9[%c0_26, %c12] : memref<64x36xbf16, #tpu.memory_space<vmem>>, vector<64x4xbf16>
    tpu.vector_store %arg9[%c0_26, %c12], %88 {strides = array<i32>} : memref<64x36xbf16, #tpu.memory_space<vmem>>, vector<64x4xbf16>,
    %90 = vector.extract_strided_slice %80 {offsets = [16, 0], sizes = [64, 4], strides = [1, 1]} : vector<96x4xbf16> to vector<64x4xbf16>
    %c0_27 = arith.constant 0 : index
    %c16 = arith.constant 16 : index
    %91 = vector.load %arg9[%c0_27, %c16] : memref<64x36xbf16, #tpu.memory_space<vmem>>, vector<64x4xbf16>
    tpu.vector_store %arg9[%c0_27, %c16], %90 {strides = array<i32>} : memref<64x36xbf16, #tpu.memory_space<vmem>>, vector<64x4xbf16>,
    %92 = vector.extract_strided_slice %81 {offsets = [16, 0], sizes = [64, 4], strides = [1, 1]} : vector<96x4xbf16> to vector<64x4xbf16>
    %c0_28 = arith.constant 0 : index
    %c20 = arith.constant 20 : index
    %93 = vector.load %arg9[%c0_28, %c20] : memref<64x36xbf16, #tpu.memory_space<vmem>>, vector<64x4xbf16>
    tpu.vector_store %arg9[%c0_28, %c20], %92 {strides = array<i32>} : memref<64x36xbf16, #tpu.memory_space<vmem>>, vector<64x4xbf16>,
    %94 = vector.extract_strided_slice %79 {offsets = [32, 0], sizes = [64, 4], strides = [1, 1]} : vector<96x4xbf16> to vector<64x4xbf16>
    %c0_29 = arith.constant 0 : index
    %c24 = arith.constant 24 : index
    %95 = vector.load %arg9[%c0_29, %c24] : memref<64x36xbf16, #tpu.memory_space<vmem>>, vector<64x4xbf16>
    tpu.vector_store %arg9[%c0_29, %c24], %94 {strides = array<i32>} : memref<64x36xbf16, #tpu.memory_space<vmem>>, vector<64x4xbf16>,
    %96 = vector.extract_strided_slice %80 {offsets = [32, 0], sizes = [64, 4], strides = [1, 1]} : vector<96x4xbf16> to vector<64x4xbf16>
    %c0_30 = arith.constant 0 : index
    %c28 = arith.constant 28 : index
    %97 = vector.load %arg9[%c0_30, %c28] : memref<64x36xbf16, #tpu.memory_space<vmem>>, vector<64x4xbf16>
    tpu.vector_store %arg9[%c0_30, %c28], %96 {strides = array<i32>} : memref<64x36xbf16, #tpu.memory_space<vmem>>, vector<64x4xbf16>,
    %98 = vector.extract_strided_slice %81 {offsets = [32, 0], sizes = [64, 4], strides = [1, 1]} : vector<96x4xbf16> to vector<64x4xbf16>
    %c0_31 = arith.constant 0 : index
    %c32 = arith.constant 32 : index
    %99 = vector.load %arg9[%c0_31, %c32] : memref<64x36xbf16, #tpu.memory_space<vmem>>, vector<64x4xbf16>
    tpu.vector_store %arg9[%c0_31, %c32], %98 {strides = array<i32>} : memref<64x36xbf16, #tpu.memory_space<vmem>>, vector<64x4xbf16>,
    %c0_32 = arith.constant 0 : index
    %c0_33 = arith.constant 0 : index
    %100 = vector.load %arg9[%c0_32, %c0_33] : memref<64x36xbf16, #tpu.memory_space<vmem>>, vector<64x36xbf16>
    %c0_34 = arith.constant 0 : index
    %c0_35 = arith.constant 0 : index
    %101 = vector.load %arg5[%c0_34, %c0_35] : memref<36x4xbf16, #tpu.memory_space<vmem>>, vector<36x4xbf16>
    %cst_36 = arith.constant dense<0.000000e+00> : vector<64x4xf32>
    %102 = tpu.matmul %100, %101, %cst_36 {dimension_numbers = #tpu.dot_dimension_numbers<[1], [0], [0], [1], [0, 0, 1, 1], [], []>} : vector<64x36xbf16>, vector<36x4xbf16>, vector<64x4xf32> -> vector<64x4xf32>
    %c0_37 = arith.constant 0 : index
    %c0_38 = arith.constant 0 : index
    %103 = vector.load %arg6[%c0_37, %c0_38] : memref<1x4xf32, #tpu.memory_space<vmem>>, vector<1x4xf32>
    %104 = vector.broadcast %103 : vector<1x4xf32> to vector<64x4xf32>
    %105 = arith.addf %102, %104 : vector<64x4xf32>
    %c0_39 = arith.constant 0 : index
    %c0_40 = arith.constant 0 : index
    %c0_41 = arith.constant 0 : index
    %106 = vector.load %arg7[%c0_39, %c0_40, %c0_41] : memref<1x64x4xf32, #tpu.memory_space<vmem>>, vector<1x64x4xf32>
    %107 = vector.shape_cast %106 : vector<1x64x4xf32> to vector<64x4xf32>
    %108 = vector.shape_cast %105 : vector<64x4xf32> to vector<1x64x4xf32>
    tpu.vector_store %arg7[%c0_39, %c0_40, %c0_41], %108 {strides = array<i32>} : memref<1x64x4xf32, #tpu.memory_space<vmem>>, vector<1x64x4xf32>,
    %cst_42 = arith.constant dense<0.000000e+00> : vector<4xf32>
    %109 = vector.multi_reduction <add>, %105, %cst_42 [0] : vector<64x4xf32> to vector<4xf32>
    %110 = vector.shape_cast %109 : vector<4xf32> to vector<1x4xf32>
    %111 = arith.mulf %105, %105 : vector<64x4xf32>
    %cst_43 = arith.constant dense<0.000000e+00> : vector<4xf32>
    %112 = vector.multi_reduction <add>, %111, %cst_43 [0] : vector<64x4xf32> to vector<4xf32>
    %113 = vector.shape_cast %112 : vector<4xf32> to vector<1x4xf32>
    %114 = tpu.concatenate %110, %113 in 0 : vector<1x4xf32>, vector<1x4xf32> -> vector<2x4xf32>
    %c0_44 = arith.constant 0 : index
    %c0_45 = arith.constant 0 : index
    %c0_46 = arith.constant 0 : index
    %c0_47 = arith.constant 0 : index
    %115 = vector.load %arg8[%c0_44, %c0_45, %c0_46, %c0_47] : memref<1x1x2x4xf32, #tpu.memory_space<vmem>>, vector<1x1x2x4xf32>
    %116 = vector.shape_cast %115 : vector<1x1x2x4xf32> to vector<2x4xf32>
    %117 = vector.shape_cast %114 : vector<2x4xf32> to vector<1x1x2x4xf32>
    tpu.vector_store %arg8[%c0_44, %c0_45, %c0_46, %c0_47], %117 {strides = array<i32>} : memref<1x1x2x4xf32, #tpu.memory_space<vmem>>, vector<1x1x2x4xf32>,
    return
  }
  func.func @transform_0(%arg0: i32, %arg1: i32) -> (i32, i32, i32) {
    %c0_i32 = arith.constant 0 : i32
    %c0_i32_0 = arith.constant 0 : i32
    %c0_i32_1 = arith.constant 0 : i32
    return %arg0, %c0_i32, %c0_i32_0 : i32, i32, i32
  }
  func.func @transform_1(%arg0: i32, %arg1: i32) -> (i32, i32) {
    %c0_i32 = arith.constant 0 : i32
    %c0_i32_0 = arith.constant 0 : i32
    %c0_i32_1 = arith.constant 0 : i32
    return %c0_i32, %c0_i32_0 : i32, i32
  }
  func.func @transform_2(%arg0: i32, %arg1: i32) -> (i32, i32) {
    %c0_i32 = arith.constant 0 : i32
    %c0_i32_0 = arith.constant 0 : i32
    %c0_i32_1 = arith.constant 0 : i32
    return %c0_i32, %c0_i32_0 : i32, i32
  }
  func.func @transform_3(%arg0: i32, %arg1: i32) -> (i32, i32) {
    %c0_i32 = arith.constant 0 : i32
    %c0_i32_0 = arith.constant 0 : i32
    %c0_i32_1 = arith.constant 0 : i32
    return %c0_i32, %c0_i32_0 : i32, i32
  }
  func.func @transform_4(%arg0: i32, %arg1: i32) -> (i32, i32) {
    %c0_i32 = arith.constant 0 : i32
    %c0_i32_0 = arith.constant 0 : i32
    %c0_i32_1 = arith.constant 0 : i32
    return %c0_i32, %c0_i32_0 : i32, i32
  }
  func.func @transform_5(%arg0: i32, %arg1: i32) -> (i32, i32, i32) {
    %c0_i32 = arith.constant 0 : i32
    %c0_i32_0 = arith.constant 0 : i32
    return %arg0, %arg1, %c0_i32 : i32, i32, i32
  }
  func.func @transform_6(%arg0: i32, %arg1: i32) -> (i32, i32, i32, i32) {
    %c0_i32 = arith.constant 0 : i32
    %c0_i32_0 = arith.constant 0 : i32
    %c0_i32_1 = arith.constant 0 : i32
    return %arg0, %arg1, %c0_i32, %c0_i32_0 : i32, i32, i32, i32
  }
}

module attributes {stable_mosaic.version = 11 : i64} {
  func.func @_fused_conv3x3_kernel(%arg0: i32, %arg1: i32, %arg2: memref<1x256x4xf32, #tpu.memory_space<vmem>>, %arg3: memref<1x4xf32, #tpu.memory_space<vmem>>, %arg4: memref<1x4xf32, #tpu.memory_space<vmem>>, %arg5: memref<36x4xbf16, #tpu.memory_space<vmem>>, %arg6: memref<1x4xf32, #tpu.memory_space<vmem>>, %arg7: memref<1x64x4xf32, #tpu.memory_space<vmem>>, %arg8: memref<1x1x2x4xf32, #tpu.memory_space<vmem>>, %arg9: memref<64x36xbf16, #tpu.memory_space<vmem>>) attributes {dimension_semantics = [#tpu.dimension_semantics<parallel>, #tpu.dimension_semantics<parallel>], iteration_bounds = array<i64: 2, 4>, scalar_prefetch = 0 : i64, scratch_operands = 1 : i64, tpu.core_type = #tpu.core_type<tc>, window_params = [{transform_indices = @transform_0, window_bounds = array<i64: 1, 256, 4>}, {pipeline_mode = #tpu.pipeline_mode<synchronous>, transform_indices = @transform_1, window_bounds = array<i64: 1, 4>}, {pipeline_mode = #tpu.pipeline_mode<synchronous>, transform_indices = @transform_2, window_bounds = array<i64: 1, 4>}, {pipeline_mode = #tpu.pipeline_mode<synchronous>, transform_indices = @transform_3, window_bounds = array<i64: 36, 4>}, {pipeline_mode = #tpu.pipeline_mode<synchronous>, transform_indices = @transform_4, window_bounds = array<i64: 1, 4>}, {transform_indices = @transform_5, window_bounds = array<i64: 1, 64, 4>}, {transform_indices = @transform_6, window_bounds = array<i64: 1, 1, 2, 4>}]} {
    %c0 = arith.constant 0 : index
    %c0_0 = arith.constant 0 : index
    %0 = vector.load %arg3[%c0, %c0_0] : memref<1x4xf32, #tpu.memory_space<vmem>>, vector<1x4xf32>
    %c0_1 = arith.constant 0 : index
    %c0_2 = arith.constant 0 : index
    %1 = vector.load %arg4[%c0_1, %c0_2] : memref<1x4xf32, #tpu.memory_space<vmem>>, vector<1x4xf32>
    %c64_i32 = arith.constant 64 : i32
    %2 = arith.muli %arg1, %c64_i32 : i32
    %3 = tpu.assume_multiple %2, 64 : i32
    %c0_3 = arith.constant 0 : index
    %4 = arith.index_cast %3 : i32 to index
    %c0_4 = arith.constant 0 : index
    %5 = vector.load %arg2[%c0_3, %4, %c0_4] : memref<1x256x4xf32, #tpu.memory_space<vmem>>, vector<1x64x4xf32>
    %6 = vector.shape_cast %5 : vector<1x64x4xf32> to vector<64x4xf32>
    %7 = vector.broadcast %0 : vector<1x4xf32> to vector<64x4xf32>
    %8 = arith.mulf %6, %7 : vector<64x4xf32>
    %9 = vector.broadcast %1 : vector<1x4xf32> to vector<64x4xf32>
    %10 = arith.addf %8, %9 : vector<64x4xf32>
    %cst = arith.constant 0.000000e+00 : f32
    %11 = vector.broadcast %cst : f32 to vector<64x4xf32>
    %12 = arith.maximumf %10, %11 : vector<64x4xf32>
    %c16_i32 = arith.constant 16 : i32
    %13 = arith.subi %3, %c16_i32 : i32
    %c0_i32 = arith.constant 0 : i32
    %14 = arith.maxsi %13, %c0_i32 : i32
    %15 = tpu.assume_multiple %14, 16 : i32
    %c64_i32_5 = arith.constant 64 : i32
    %16 = arith.addi %3, %c64_i32_5 : i32
    %c240_i32 = arith.constant 240 : i32
    %17 = arith.minsi %16, %c240_i32 : i32
    %18 = tpu.assume_multiple %17, 16 : i32
    %c0_i32_6 = arith.constant 0 : i32
    %19 = arith.cmpi sgt, %arg1, %c0_i32_6 : i32
    %20 = arith.extui %19 : i1 to i32
    %21 = arith.sitofp %20 : i32 to f32
    %c3_i32 = arith.constant 3 : i32
    %22 = arith.cmpi slt, %arg1, %c3_i32 : i32
    %23 = arith.extui %22 : i1 to i32
    %24 = arith.sitofp %23 : i32 to f32
    %c0_7 = arith.constant 0 : index
    %25 = arith.index_cast %15 : i32 to index
    %c0_8 = arith.constant 0 : index
    %26 = vector.load %arg2[%c0_7, %25, %c0_8] : memref<1x256x4xf32, #tpu.memory_space<vmem>>, vector<1x16x4xf32>
    %27 = vector.shape_cast %26 : vector<1x16x4xf32> to vector<16x4xf32>
    %28 = vector.broadcast %0 : vector<1x4xf32> to vector<16x4xf32>
    %29 = arith.mulf %27, %28 : vector<16x4xf32>
    %30 = vector.broadcast %1 : vector<1x4xf32> to vector<16x4xf32>
    %31 = arith.addf %29, %30 : vector<16x4xf32>
    %cst_9 = arith.constant 0.000000e+00 : f32
    %32 = vector.broadcast %cst_9 : f32 to vector<16x4xf32>
    %33 = arith.maximumf %31, %32 : vector<16x4xf32>
    %34 = vector.broadcast %21 : f32 to vector<16x4xf32>
    %35 = arith.mulf %33, %34 : vector<16x4xf32>
    %c0_10 = arith.constant 0 : index
    %36 = arith.index_cast %18 : i32 to index
    %c0_11 = arith.constant 0 : index
    %37 = vector.load %arg2[%c0_10, %36, %c0_11] : memref<1x256x4xf32, #tpu.memory_space<vmem>>, vector<1x16x4xf32>
    %38 = vector.shape_cast %37 : vector<1x16x4xf32> to vector<16x4xf32>
    %39 = vector.broadcast %0 : vector<1x4xf32> to vector<16x4xf32>
    %40 = arith.mulf %38, %39 : vector<16x4xf32>
    %41 = vector.broadcast %1 : vector<1x4xf32> to vector<16x4xf32>
    %42 = arith.addf %40, %41 : vector<16x4xf32>
    %cst_12 = arith.constant 0.000000e+00 : f32
    %43 = vector.broadcast %cst_12 : f32 to vector<16x4xf32>
    %44 = arith.maximumf %42, %43 : vector<16x4xf32>
    %45 = vector.broadcast %24 : f32 to vector<16x4xf32>
    %46 = arith.mulf %44, %45 : vector<16x4xf32>
    %47 = tpu.concatenate %35, %12, %46 in 0 : vector<16x4xf32>, vector<64x4xf32>, vector<16x4xf32> -> vector<96x4xf32>
    %48 = tpu.iota {dimensions = array<i32: 0>} : vector<96x1xi32>
    %c16_i32_13 = arith.constant 16 : i32
    %c0_i32_14 = arith.constant 0 : i32
    %49 = arith.cmpi eq, %c16_i32_13, %c0_i32_14 : i32
    %c1_i32 = arith.constant 1 : i32
    %50 = arith.select %49, %c1_i32, %c16_i32_13 : i32
    %51 = vector.broadcast %50 : i32 to vector<96x1xi32>
    %52 = arith.remsi %48, %51 : vector<96x1xi32>
    %c0_i32_15 = arith.constant 0 : i32
    %53 = vector.broadcast %c0_i32_15 : i32 to vector<96x1xi32>
    %54 = arith.cmpi ne, %52, %53 : vector<96x1xi32>
    %c0_i32_16 = arith.constant 0 : i32
    %55 = vector.broadcast %c0_i32_16 : i32 to vector<96x1xi32>
    %56 = arith.cmpi slt, %52, %55 : vector<96x1xi32>
    %c0_i32_17 = arith.constant 0 : i32
    %57 = arith.cmpi slt, %50, %c0_i32_17 : i32
    %58 = vector.broadcast %57 : i1 to vector<96x1xi1>
    %59 = vector.broadcast %58 : vector<96x1xi1> to vector<96x1xi1>
    %60 = arith.xori %56, %59 : vector<96x1xi1>
    %61 = arith.andi %60, %54 : vector<96x1xi1>
    %62 = vector.broadcast %50 : i32 to vector<96x1xi32>
    %63 = arith.addi %52, %62 : vector<96x1xi32>
    %64 = arith.select %61, %63, %52 : vector<96x1xi1>, vector<96x1xi32>
    %c0_i32_18 = arith.constant 0 : i32
    %65 = vector.broadcast %c0_i32_18 : i32 to vector<96x1xi32>
    %66 = arith.cmpi eq, %64, %65 : vector<96x1xi32>
    %67 = vector.extract_strided_slice %47 {offsets = [95, 0], sizes = [1, 4], strides = [1, 1]} : vector<96x4xf32> to vector<1x4xf32>
    %68 = vector.extract_strided_slice %47 {offsets = [0, 0], sizes = [95, 4], strides = [1, 1]} : vector<96x4xf32> to vector<95x4xf32>
    %69 = tpu.concatenate %67, %68 in 0 : vector<1x4xf32>, vector<95x4xf32> -> vector<96x4xf32>
    %cst_19 = arith.constant 0.000000e+00 : f32
    %70 = vector.shape_cast %66 : vector<96x1xi1> to vector<96x1xi1>
    %71 = vector.broadcast %70 : vector<96x1xi1> to vector<96x4xi1>
    %72 = vector.broadcast %cst_19 : f32 to vector<96x4xf32>
    %73 = arith.select %71, %72, %69 : vector<96x4xi1>, vector<96x4xf32>
    %c15_i32 = arith.constant 15 : i32
    %74 = vector.broadcast %c15_i32 : i32 to vector<96x1xi32>
    %75 = arith.cmpi eq, %64, %74 : vector<96x1xi32>
    %76 = vector.extract_strided_slice %47 {offsets = [1, 0], sizes = [95, 4], strides = [1, 1]} : vector<96x4xf32> to vector<95x4xf32>
    %77 = vector.extract_strided_slice %47 {offsets = [0, 0], sizes = [1, 4], strides = [1, 1]} : vector<96x4xf32> to vector<1x4xf32>
    %78 = tpu.concatenate %76, %77 in 0 : vector<95x4xf32>, vector<1x4xf32> -> vector<96x4xf32>
    %cst_20 = arith.constant 0.000000e+00 : f32
    %79 = vector.shape_cast %75 : vector<96x1xi1> to vector<96x1xi1>
    %80 = vector.broadcast %79 : vector<96x1xi1> to vector<96x4xi1>
    %81 = vector.broadcast %cst_20 : f32 to vector<96x4xf32>
    %82 = arith.select %80, %81, %78 : vector<96x4xi1>, vector<96x4xf32>
    %83 = arith.truncf %73 : vector<96x4xf32> to vector<96x4xbf16>
    %84 = arith.truncf %47 : vector<96x4xf32> to vector<96x4xbf16>
    %85 = arith.truncf %82 : vector<96x4xf32> to vector<96x4xbf16>
    %86 = vector.extract_strided_slice %83 {offsets = [0, 0], sizes = [64, 4], strides = [1, 1]} : vector<96x4xbf16> to vector<64x4xbf16>
    %c0_21 = arith.constant 0 : index
    %c0_22 = arith.constant 0 : index
    %87 = vector.load %arg9[%c0_21, %c0_22] : memref<64x36xbf16, #tpu.memory_space<vmem>>, vector<64x4xbf16>
    tpu.vector_store %arg9[%c0_21, %c0_22], %86 {strides = array<i32>} : memref<64x36xbf16, #tpu.memory_space<vmem>>, vector<64x4xbf16>,
    %88 = vector.extract_strided_slice %84 {offsets = [0, 0], sizes = [64, 4], strides = [1, 1]} : vector<96x4xbf16> to vector<64x4xbf16>
    %c0_23 = arith.constant 0 : index
    %c4 = arith.constant 4 : index
    %89 = vector.load %arg9[%c0_23, %c4] : memref<64x36xbf16, #tpu.memory_space<vmem>>, vector<64x4xbf16>
    tpu.vector_store %arg9[%c0_23, %c4], %88 {strides = array<i32>} : memref<64x36xbf16, #tpu.memory_space<vmem>>, vector<64x4xbf16>,
    %90 = vector.extract_strided_slice %85 {offsets = [0, 0], sizes = [64, 4], strides = [1, 1]} : vector<96x4xbf16> to vector<64x4xbf16>
    %c0_24 = arith.constant 0 : index
    %c8 = arith.constant 8 : index
    %91 = vector.load %arg9[%c0_24, %c8] : memref<64x36xbf16, #tpu.memory_space<vmem>>, vector<64x4xbf16>
    tpu.vector_store %arg9[%c0_24, %c8], %90 {strides = array<i32>} : memref<64x36xbf16, #tpu.memory_space<vmem>>, vector<64x4xbf16>,
    %92 = vector.extract_strided_slice %83 {offsets = [16, 0], sizes = [64, 4], strides = [1, 1]} : vector<96x4xbf16> to vector<64x4xbf16>
    %c0_25 = arith.constant 0 : index
    %c12 = arith.constant 12 : index
    %93 = vector.load %arg9[%c0_25, %c12] : memref<64x36xbf16, #tpu.memory_space<vmem>>, vector<64x4xbf16>
    tpu.vector_store %arg9[%c0_25, %c12], %92 {strides = array<i32>} : memref<64x36xbf16, #tpu.memory_space<vmem>>, vector<64x4xbf16>,
    %94 = vector.extract_strided_slice %84 {offsets = [16, 0], sizes = [64, 4], strides = [1, 1]} : vector<96x4xbf16> to vector<64x4xbf16>
    %c0_26 = arith.constant 0 : index
    %c16 = arith.constant 16 : index
    %95 = vector.load %arg9[%c0_26, %c16] : memref<64x36xbf16, #tpu.memory_space<vmem>>, vector<64x4xbf16>
    tpu.vector_store %arg9[%c0_26, %c16], %94 {strides = array<i32>} : memref<64x36xbf16, #tpu.memory_space<vmem>>, vector<64x4xbf16>,
    %96 = vector.extract_strided_slice %85 {offsets = [16, 0], sizes = [64, 4], strides = [1, 1]} : vector<96x4xbf16> to vector<64x4xbf16>
    %c0_27 = arith.constant 0 : index
    %c20 = arith.constant 20 : index
    %97 = vector.load %arg9[%c0_27, %c20] : memref<64x36xbf16, #tpu.memory_space<vmem>>, vector<64x4xbf16>
    tpu.vector_store %arg9[%c0_27, %c20], %96 {strides = array<i32>} : memref<64x36xbf16, #tpu.memory_space<vmem>>, vector<64x4xbf16>,
    %98 = vector.extract_strided_slice %83 {offsets = [32, 0], sizes = [64, 4], strides = [1, 1]} : vector<96x4xbf16> to vector<64x4xbf16>
    %c0_28 = arith.constant 0 : index
    %c24 = arith.constant 24 : index
    %99 = vector.load %arg9[%c0_28, %c24] : memref<64x36xbf16, #tpu.memory_space<vmem>>, vector<64x4xbf16>
    tpu.vector_store %arg9[%c0_28, %c24], %98 {strides = array<i32>} : memref<64x36xbf16, #tpu.memory_space<vmem>>, vector<64x4xbf16>,
    %100 = vector.extract_strided_slice %84 {offsets = [32, 0], sizes = [64, 4], strides = [1, 1]} : vector<96x4xbf16> to vector<64x4xbf16>
    %c0_29 = arith.constant 0 : index
    %c28 = arith.constant 28 : index
    %101 = vector.load %arg9[%c0_29, %c28] : memref<64x36xbf16, #tpu.memory_space<vmem>>, vector<64x4xbf16>
    tpu.vector_store %arg9[%c0_29, %c28], %100 {strides = array<i32>} : memref<64x36xbf16, #tpu.memory_space<vmem>>, vector<64x4xbf16>,
    %102 = vector.extract_strided_slice %85 {offsets = [32, 0], sizes = [64, 4], strides = [1, 1]} : vector<96x4xbf16> to vector<64x4xbf16>
    %c0_30 = arith.constant 0 : index
    %c32 = arith.constant 32 : index
    %103 = vector.load %arg9[%c0_30, %c32] : memref<64x36xbf16, #tpu.memory_space<vmem>>, vector<64x4xbf16>
    tpu.vector_store %arg9[%c0_30, %c32], %102 {strides = array<i32>} : memref<64x36xbf16, #tpu.memory_space<vmem>>, vector<64x4xbf16>,
    %c0_31 = arith.constant 0 : index
    %c0_32 = arith.constant 0 : index
    %104 = vector.load %arg9[%c0_31, %c0_32] : memref<64x36xbf16, #tpu.memory_space<vmem>>, vector<64x36xbf16>
    %c0_33 = arith.constant 0 : index
    %c0_34 = arith.constant 0 : index
    %105 = vector.load %arg5[%c0_33, %c0_34] : memref<36x4xbf16, #tpu.memory_space<vmem>>, vector<36x4xbf16>
    %cst_35 = arith.constant dense<0.000000e+00> : vector<64x4xf32>
    %106 = tpu.matmul %104, %105, %cst_35 {dimension_numbers = #tpu.dot_dimension_numbers<[1], [0], [0], [1], [0, 0, 1, 1], [], []>} : vector<64x36xbf16>, vector<36x4xbf16>, vector<64x4xf32> -> vector<64x4xf32>
    %c0_36 = arith.constant 0 : index
    %c0_37 = arith.constant 0 : index
    %107 = vector.load %arg6[%c0_36, %c0_37] : memref<1x4xf32, #tpu.memory_space<vmem>>, vector<1x4xf32>
    %108 = vector.broadcast %107 : vector<1x4xf32> to vector<64x4xf32>
    %109 = arith.addf %106, %108 : vector<64x4xf32>
    %c0_38 = arith.constant 0 : index
    %c0_39 = arith.constant 0 : index
    %c0_40 = arith.constant 0 : index
    %110 = vector.load %arg7[%c0_38, %c0_39, %c0_40] : memref<1x64x4xf32, #tpu.memory_space<vmem>>, vector<1x64x4xf32>
    %111 = vector.shape_cast %110 : vector<1x64x4xf32> to vector<64x4xf32>
    %112 = vector.shape_cast %109 : vector<64x4xf32> to vector<1x64x4xf32>
    tpu.vector_store %arg7[%c0_38, %c0_39, %c0_40], %112 {strides = array<i32>} : memref<1x64x4xf32, #tpu.memory_space<vmem>>, vector<1x64x4xf32>,
    %cst_41 = arith.constant dense<0.000000e+00> : vector<4xf32>
    %113 = vector.multi_reduction <add>, %109, %cst_41 [0] : vector<64x4xf32> to vector<4xf32>
    %114 = vector.shape_cast %113 : vector<4xf32> to vector<1x4xf32>
    %115 = arith.mulf %109, %109 : vector<64x4xf32>
    %cst_42 = arith.constant dense<0.000000e+00> : vector<4xf32>
    %116 = vector.multi_reduction <add>, %115, %cst_42 [0] : vector<64x4xf32> to vector<4xf32>
    %117 = vector.shape_cast %116 : vector<4xf32> to vector<1x4xf32>
    %118 = tpu.concatenate %114, %117 in 0 : vector<1x4xf32>, vector<1x4xf32> -> vector<2x4xf32>
    %c0_43 = arith.constant 0 : index
    %c0_44 = arith.constant 0 : index
    %c0_45 = arith.constant 0 : index
    %c0_46 = arith.constant 0 : index
    %119 = vector.load %arg8[%c0_43, %c0_44, %c0_45, %c0_46] : memref<1x1x2x4xf32, #tpu.memory_space<vmem>>, vector<1x1x2x4xf32>
    %120 = vector.shape_cast %119 : vector<1x1x2x4xf32> to vector<2x4xf32>
    %121 = vector.shape_cast %118 : vector<2x4xf32> to vector<1x1x2x4xf32>
    tpu.vector_store %arg8[%c0_43, %c0_44, %c0_45, %c0_46], %121 {strides = array<i32>} : memref<1x1x2x4xf32, #tpu.memory_space<vmem>>, vector<1x1x2x4xf32>,
    return
  }
  func.func @transform_0(%arg0: i32, %arg1: i32) -> (i32, i32, i32) {
    %c0_i32 = arith.constant 0 : i32
    %c0_i32_0 = arith.constant 0 : i32
    %c0_i32_1 = arith.constant 0 : i32
    return %arg0, %c0_i32, %c0_i32_0 : i32, i32, i32
  }
  func.func @transform_1(%arg0: i32, %arg1: i32) -> (i32, i32) {
    %c0_i32 = arith.constant 0 : i32
    %c0_i32_0 = arith.constant 0 : i32
    %c0_i32_1 = arith.constant 0 : i32
    return %c0_i32, %c0_i32_0 : i32, i32
  }
  func.func @transform_2(%arg0: i32, %arg1: i32) -> (i32, i32) {
    %c0_i32 = arith.constant 0 : i32
    %c0_i32_0 = arith.constant 0 : i32
    %c0_i32_1 = arith.constant 0 : i32
    return %c0_i32, %c0_i32_0 : i32, i32
  }
  func.func @transform_3(%arg0: i32, %arg1: i32) -> (i32, i32) {
    %c0_i32 = arith.constant 0 : i32
    %c0_i32_0 = arith.constant 0 : i32
    %c0_i32_1 = arith.constant 0 : i32
    return %c0_i32, %c0_i32_0 : i32, i32
  }
  func.func @transform_4(%arg0: i32, %arg1: i32) -> (i32, i32) {
    %c0_i32 = arith.constant 0 : i32
    %c0_i32_0 = arith.constant 0 : i32
    %c0_i32_1 = arith.constant 0 : i32
    return %c0_i32, %c0_i32_0 : i32, i32
  }
  func.func @transform_5(%arg0: i32, %arg1: i32) -> (i32, i32, i32) {
    %c0_i32 = arith.constant 0 : i32
    %c0_i32_0 = arith.constant 0 : i32
    return %arg0, %arg1, %c0_i32 : i32, i32, i32
  }
  func.func @transform_6(%arg0: i32, %arg1: i32) -> (i32, i32, i32, i32) {
    %c0_i32 = arith.constant 0 : i32
    %c0_i32_0 = arith.constant 0 : i32
    %c0_i32_1 = arith.constant 0 : i32
    return %arg0, %arg1, %c0_i32, %c0_i32_0 : i32, i32, i32, i32
  }
}

</mosaic_0001>

<llo_original>
// kernel: tpu_custom_call.1
$region0: #{tpu_custom_call.1}
  #allocation0 [shape = 'u32[]', space=smem, size = 0x4, offset = 0x4, fixed_abs, tag = 'smem constant byte address 0x4 - core index']
  #allocation1 [shape = 'u32[144,128]{1,0:T(1,128)}', space=vmem, size = 0x12000, scoped, tag = 'internal scratch']
  #allocation2 [shape = 'bf16[64,36]{1,0:T(16,128)(2,1)}', space=vmem, size = 0x4000, scoped, tag = 'scratch operand']
  %s0 = inlined_call_operand.vmem [shape: f32[2,256,4], index: 0, kind: input, shape index: {}]
  %s1 = inlined_call_operand.vmem [shape: f32[1,4], index: 1, kind: input, shape index: {}]
  %s2 = inlined_call_operand.vmem [shape: f32[1,4], index: 2, kind: input, shape index: {}]
  %s3 = inlined_call_operand.vmem [shape: bf16[36,4], index: 3, kind: input, shape index: {}]
  %s4 = inlined_call_operand.vmem [shape: f32[1,4], index: 4, kind: input, shape index: {}]
  %s5 = inlined_call_operand.vmem [shape: f32[2,256,4], index: 5, kind: output, shape index: {0}]
  %s6 = inlined_call_operand.hbm [shape: f32[2,4,2,4], index: 6, kind: output, shape index: {1}]
  %7 = xla_tuple %s5, %s6
  %s8 = sld [smem:[#allocation0]]
  $region61: #{tpu_custom_call.1} parent=0
    _
  %s10 = ssub.s32 1, %s8
  %s11 = scalar_select 0, %s10, %s8
  $region1: #{tpu_custom_call.1} parent=0
    #allocation3 [shape = 'u8[2048]{0}', space=vmem, size = 0x800, scoped, tag = 'output window, operand 1']
    #allocation4 [shape = 's32[2]{0}', space=sflag, size = 0x8, scoped, tag = 'scoped memory for tpu_custom_call.1']
    %12 = vsyncpa [#allocation4], 0
    %s13 = scalar_lea.sflag [#allocation4], 1
    %14 = vsyncpa %s13, 0
    loop: start=0, step=1, limit=10
    $region2: #{tpu_custom_call.1} parent=1 // loop_pre_header
      _
    $region3: #{tpu_custom_call.1} parent=1 // loop_header
      %s16 = sphi 0, %s20
      %p17 = scmp.ge.s32.totalorder %s16, 10
      %s23 = sphi 0, %s35
      %s24 = sphi 0, %s31
      %s25 = sphi 0, %s23
      %s26 = sphi 0, %s24
      %s27 = sphi 0, %s25
      %s28 = sphi 0, %s26
      %s38 = sphi 0, %s40
      %s41 = sphi 0, %s38
      %s42 = sphi 0, %s41
      %s58 = sphi 0, %s42
      %s62 = sphi 0, %s62
      %s64 = sphi 0, %s62
      %s65 = sphi 0, %s64
      %s79 = sphi 0, %s65
      %s83 = sphi 0, %s83
      %s85 = sphi 0, %s83
      %s86 = sphi 0, %s85
      %s100 = sphi 0, %s86
      %s104 = sphi 0, %s104
      %s106 = sphi 0, %s104
      %s107 = sphi 0, %s106
      %s121 = sphi 0, %s107
      %s125 = sphi 0, %s125
      %s127 = sphi 0, %s125
      %s128 = sphi 0, %s127
      %s142 = sphi 0, %s128
      %s150 = sphi 0, %s152
      %s153 = sphi 0, %s150
      %s154 = sphi 0, %s153
      %s170 = sphi 0, %s154
      %s178 = sphi 0, %s180
      %s181 = sphi 0, %s178
      %s182 = sphi 0, %s181
      %s198 = sphi 0, %s182
    $region4: #{tpu_custom_call.1} parent=1 // loop_header_branch
      %19 = sbr.rel (%p17) target = $region8
    $region5: #{tpu_custom_call.1} parent=1 // loop_body
      %s21 = ssub.s32 %s16, 1
      %s22 = ssub.s32 %s16, 2
      %s29 = sadd.s32 1, %s24
      %p30 = scmp.ge.s32.totalorder %s29, 4
      %s31 = scalar_select %p30, 0, %s29
      %s32 = sadd.s32 1, %s23
      %s33 = scalar_select %p30, %s32, %s23
      %p34 = scmp.ge.s32.totalorder %s33, 2
      %s35 = scalar_select %p34, 0, %s33
      %s36 = ssub.s32 %s23, %s35
      %p37 = scmp.eq.s32.totalorder %s36, 0
      %s39 = sadd.s32 %s38, 1
      %s40 = scalar_select %p37, %s38, %s39
      %p43 = pneg %p37
      %p44 = scmp.eq.s32.totalorder %s16, 7
      %p45 = por %p43, %p44
      %p46 = scmp.ne.s32.totalorder %s38, %s41
      %p47 = scmp.eq.s32.totalorder %s16, 0
      %p48 = por %p46, %p47
      %p49 = scmp.ne.s32.totalorder %s38, %s41
      %p50 = scmp.eq.s32.totalorder %s21, 7
      %p51 = por %p49, %p50
      %p52 = scmp.ne.s32.totalorder %s41, %s42
      %p53 = scmp.eq.s32.totalorder %s21, 0
      %p54 = por %p52, %p53
      %p55 = scmp.ne.s32.totalorder %s41, %s42
      %p56 = scmp.eq.s32.totalorder %s22, 7
      %p57 = por %p55, %p56
      %p59 = scmp.ne.s32.totalorder %s42, %s58
      %p60 = scmp.eq.s32.totalorder %s22, 0
      %p61 = por %p59, %p60
      %s63 = sadd.s32 %s62, 1
      %p66 = scmp.eq.s32.totalorder %s16, 7
      %p67 = scmp.ne.s32.totalorder %s62, %s64
      %p68 = scmp.eq.s32.totalorder %s16, 0
      %p69 = por %p67, %p68
      %p70 = scmp.ne.s32.totalorder %s62, %s64
      %p71 = scmp.eq.s32.totalorder %s21, 7
      %p72 = por %p70, %p71
      %p73 = scmp.ne.s32.totalorder %s64, %s65
      %p74 = scmp.eq.s32.totalorder %s21, 0
      %p75 = por %p73, %p74
      %p76 = scmp.ne.s32.totalorder %s64, %s65
      %p77 = scmp.eq.s32.totalorder %s22, 7
      %p78 = por %p76, %p77
      %p80 = scmp.ne.s32.totalorder %s65, %s79
      %p81 = scmp.eq.s32.totalorder %s22, 0
      %p82 = por %p80, %p81
      %s84 = sadd.s32 %s83, 1
      %p87 = scmp.eq.s32.totalorder %s16, 7
      %p88 = scmp.ne.s32.totalorder %s83, %s85
      %p89 = scmp.eq.s32.totalorder %s16, 0
      %p90 = por %p88, %p89
      %p91 = scmp.ne.s32.totalorder %s83, %s85
      %p92 = scmp.eq.s32.totalorder %s21, 7
      %p93 = por %p91, %p92
      %p94 = scmp.ne.s32.totalorder %s85, %s86
      %p95 = scmp.eq.s32.totalorder %s21, 0
      %p96 = por %p94, %p95
      %p97 = scmp.ne.s32.totalorder %s85, %s86
      %p98 = scmp.eq.s32.totalorder %s22, 7
      %p99 = por %p97, %p98
      %p101 = scmp.ne.s32.totalorder %s86, %s100
      %p102 = scmp.eq.s32.totalorder %s22, 0
      %p103 = por %p101, %p102
      %s105 = sadd.s32 %s104, 1
      %p108 = scmp.eq.s32.totalorder %s16, 7
      %p109 = scmp.ne.s32.totalorder %s104, %s106
      %p110 = scmp.eq.s32.totalorder %s16, 0
      %p111 = por %p109, %p110
      %p112 = scmp.ne.s32.totalorder %s104, %s106
      %p113 = scmp.eq.s32.totalorder %s21, 7
      %p114 = por %p112, %p113
      %p115 = scmp.ne.s32.totalorder %s106, %s107
      %p116 = scmp.eq.s32.totalorder %s21, 0
      %p117 = por %p115, %p116
      %p118 = scmp.ne.s32.totalorder %s106, %s107
      %p119 = scmp.eq.s32.totalorder %s22, 7
      %p120 = por %p118, %p119
      %p122 = scmp.ne.s32.totalorder %s107, %s121
      %p123 = scmp.eq.s32.totalorder %s22, 0
      %p124 = por %p122, %p123
      %s126 = sadd.s32 %s125, 1
      %p129 = scmp.eq.s32.totalorder %s16, 7
      %p130 = scmp.ne.s32.totalorder %s125, %s127
      %p131 = scmp.eq.s32.totalorder %s16, 0
      %p132 = por %p130, %p131
      %p133 = scmp.ne.s32.totalorder %s125, %s127
      %p134 = scmp.eq.s32.totalorder %s21, 7
      %p135 = por %p133, %p134
      %p136 = scmp.ne.s32.totalorder %s127, %s128
      %p137 = scmp.eq.s32.totalorder %s21, 0
      %p138 = por %p136, %p137
      %p139 = scmp.ne.s32.totalorder %s127, %s128
      %p140 = scmp.eq.s32.totalorder %s22, 7
      %p141 = por %p139, %p140
      %p143 = scmp.ne.s32.totalorder %s128, %s142
      %p144 = scmp.eq.s32.totalorder %s22, 0
      %p145 = por %p143, %p144
      %s146 = ssub.s32 %s23, %s35
      %s147 = ssub.s32 %s24, %s31
      %s148 = sor.u32 %s146, %s147
      %p149 = scmp.eq.s32.totalorder %s148, 0
      %s151 = sadd.s32 %s150, 1
      %s152 = scalar_select %p149, %s150, %s151
      %p155 = pneg %p149
      %p156 = scmp.eq.s32.totalorder %s16, 7
      %p157 = por %p155, %p156
      %p158 = scmp.ne.s32.totalorder %s150, %s153
      %p159 = scmp.eq.s32.totalorder %s16, 0
      %p160 = por %p158, %p159
      %p161 = scmp.ne.s32.totalorder %s150, %s153
      %p162 = scmp.eq.s32.totalorder %s21, 7
      %p163 = por %p161, %p162
      %p164 = scmp.ne.s32.totalorder %s153, %s154
      %p165 = scmp.eq.s32.totalorder %s21, 0
      %p166 = por %p164, %p165
      %p167 = scmp.ne.s32.totalorder %s153, %s154
      %p168 = scmp.eq.s32.totalorder %s22, 7
      %p169 = por %p167, %p168
      %p171 = scmp.ne.s32.totalorder %s154, %s170
      %p172 = scmp.eq.s32.totalorder %s22, 0
      %p173 = por %p171, %p172
      %s174 = ssub.s32 %s23, %s35
      %s175 = ssub.s32 %s24, %s31
      %s176 = sor.u32 %s174, %s175
      %p177 = scmp.eq.s32.totalorder %s176, 0
      %s179 = sadd.s32 %s178, 1
      %s180 = scalar_select %p177, %s178, %s179
      %p183 = pneg %p177
      %p184 = scmp.eq.s32.totalorder %s16, 7
      %p185 = por %p183, %p184
      %p186 = scmp.ne.s32.totalorder %s178, %s181
      %p187 = scmp.eq.s32.totalorder %s16, 0
      %p188 = por %p186, %p187
      %p189 = scmp.ne.s32.totalorder %s178, %s181
      %p190 = scmp.eq.s32.totalorder %s21, 7
      %p191 = por %p189, %p190
      %p192 = scmp.ne.s32.totalorder %s181, %s182
      %p193 = scmp.eq.s32.totalorder %s21, 0
      %p194 = por %p192, %p193
      %p195 = scmp.ne.s32.totalorder %s181, %s182
      %p196 = scmp.eq.s32.totalorder %s22, 7
      %p197 = por %p195, %p196
      %p199 = scmp.ne.s32.totalorder %s182, %s198
      %p200 = scmp.eq.s32.totalorder %s22, 0
      %p201 = por %p199, %p200
      %p202 = scmp.le.s32.totalorder 1, %s16
      %p203 = scmp.lt.s32.totalorder %s16, 9
      %p204 = pnand %p202, %p203
      %p205 = pneg %p204
      // Predicated region
      $region9: #{tpu_custom_call.1} parent=5 // pred_check
        _
      $region10: #{tpu_custom_call.1} parent=5 // pred_check_branch
        %207 = sbr.rel (%p204) target = $region12
      $region11: #{tpu_custom_call.1} parent=5 // pred_region
        %s208 = ssub.s32 %s16, 1
        // Predicated region
        $region13: #{tpu_custom_call.1} parent=11 // pred_check
          %p209 = pneg %p75
        $region14: #{tpu_custom_call.1} parent=11 // pred_check_branch
          %211 = sbr.rel (%p209) target = $region16
        $region15: #{tpu_custom_call.1} parent=11 // pred_region
          _
        $region16: #{tpu_custom_call.1} parent=11 // pred_fallthru
          _
        // Predicated region
        $region17: #{tpu_custom_call.1} parent=11 // pred_check
          %p212 = pneg %p96
        $region18: #{tpu_custom_call.1} parent=11 // pred_check_branch
          %214 = sbr.rel (%p212) target = $region20
        $region19: #{tpu_custom_call.1} parent=11 // pred_region
          _
        $region20: #{tpu_custom_call.1} parent=11 // pred_fallthru
          _
        // Predicated region
        $region21: #{tpu_custom_call.1} parent=11 // pred_check
          %p215 = pneg %p117
        $region22: #{tpu_custom_call.1} parent=11 // pred_check_branch
          %217 = sbr.rel (%p215) target = $region24
        $region23: #{tpu_custom_call.1} parent=11 // pred_region
          _
        $region24: #{tpu_custom_call.1} parent=11 // pred_fallthru
          _
        // Predicated region
        $region25: #{tpu_custom_call.1} parent=11 // pred_check
          %p218 = pneg %p138
        $region26: #{tpu_custom_call.1} parent=11 // pred_check_branch
          %220 = sbr.rel (%p218) target = $region28
        $region27: #{tpu_custom_call.1} parent=11 // pred_region
          _
        $region28: #{tpu_custom_call.1} parent=11 // pred_fallthru
          _
      $region12: #{tpu_custom_call.1} parent=5 // pred_fallthru
        _
      %p221 = scmp.lt.s32.totalorder %s16, 8
      // Predicated region
      $region29: #{tpu_custom_call.1} parent=5 // pred_check
        %p222 = pneg %p221
      $region30: #{tpu_custom_call.1} parent=5 // pred_check_branch
        %224 = sbr.rel (%p222) target = $region32
      $region31: #{tpu_custom_call.1} parent=5 // pred_region
        // Predicated region
        $region33: #{tpu_custom_call.1} parent=31 // pred_check
          %p225 = pneg %p48
        $region34: #{tpu_custom_call.1} parent=31 // pred_check_branch
          %227 = sbr.rel (%p225) target = $region36
        $region35: #{tpu_custom_call.1} parent=31 // pred_region
          %p228 = scmp.lt.s32.totalorder %s23, 1
          %s229 = scalar_select %p228, %s23, 1
          %s230 = smul.addr %s229, 32
          %s231 = smul.addr %s230, 8
          %s232 = scalar_lea.vmem %s0, %s231
        $region36: #{tpu_custom_call.1} parent=31 // pred_fallthru
          _
      $region32: #{tpu_custom_call.1} parent=5 // pred_fallthru
        _
      %p233 = scmp.le.s32.totalorder 1, %s16
      %p234 = scmp.lt.s32.totalorder %s16, 9
      %p235 = pnand %p233, %p234
      %p236 = pneg %p235
      // Predicated region
      $region37: #{tpu_custom_call.1} parent=5 // pred_check
        _
      $region38: #{tpu_custom_call.1} parent=5 // pred_check_branch
        %238 = sbr.rel (%p235) target = $region40
      $region39: #{tpu_custom_call.1} parent=5 // pred_region
        %s239 = ssub.s32 %s16, 1
        %p240 = scmp.lt.s32.totalorder %s25, 1
        %s241 = scalar_select %p240, %s25, 1
        %s242 = smul.addr %s241, 32
        %s243 = smul.addr %s242, 8
        %s244 = scalar_lea.vmem %s0, %s243
        %p245 = pneg %p54
        %p246 = pneg %p51
        %p247 = pneg %p75
        %p248 = pneg %p72
        %p249 = pneg %p96
        %p250 = pneg %p93
        %p251 = pneg %p117
        %p252 = pneg %p114
        %p253 = pneg %p138
        %p254 = pneg %p135
        %p255 = pneg %p166
        %p256 = pneg %p163
        %s257 = smul.u32 8, %s26
        %p258 = scmp.lt.s32.totalorder %s25, 1
        %s259 = scalar_select %p258, %s25, 1
        %p260 = scmp.lt.s32.totalorder %s257, 31
        %s261 = scalar_select %p260, %s257, 31
        %s262 = smul.addr %s259, 32
        %s263 = sadd.s32 %s261, %s262
        %s264 = smul.addr %s263, 8
        %s265 = scalar_lea.vmem %s5, %s264
        %p266 = pneg %p194
        %p267 = pneg %p191
        %s268 = sand.u32 %s181, 1
        %s269 = scalar_lea.sflag [#allocation4], %s268
        %s270 = sand.u32 %s181, 1
        %s271 = smul.addr %s270, 2
        %s272 = scalar_lea.vmem [#allocation3], %s271
        %p273 = scmp.lt.s32.totalorder %s25, 1
        %s274 = scalar_select %p273, %s25, 1
        %s275 = smul.addr %s274, 32
        %s276 = smul.addr %s275, 8
        %s277 = scalar_lea.vmem %s0, %s276
        %s278 = smul.u32 8, %s26
        %p279 = scmp.lt.s32.totalorder %s25, 1
        %s280 = scalar_select %p279, %s25, 1
        %p281 = scmp.lt.s32.totalorder %s278, 31
        %s282 = scalar_select %p281, %s278, 31
        %s283 = smul.addr %s280, 32
        %s284 = sadd.s32 %s282, %s283
        %s285 = smul.addr %s284, 8
        %s286 = scalar_lea.vmem %s5, %s285
        %s287 = smul.u32 8, %s26
        %v289 = vld [vmem:[%s1] sm:$0x1]
        %v290 = vld [vmem:[%s2] sm:$0x1]
        %s291 = smul.u32 %s26, 64
        %s292 = scalar_lea.vmem %s277, %s291
        %v293 = vld [vmem:[%s292] sm:$0xff]
        %v294 = vld [vmem:[%s292 + $0x8] sm:$0xff]
        %v295 = vld [vmem:[%s292 + $0x10] sm:$0xff]
        %v296 = vld [vmem:[%s292 + $0x18] sm:$0xff]
        %v297 = vld [vmem:[%s292 + $0x20] sm:$0xff]
        %v298 = vld [vmem:[%s292 + $0x28] sm:$0xff]
        %v299 = vld [vmem:[%s292 + $0x30] sm:$0xff]
        %v300 = vld [vmem:[%s292 + $0x38] sm:$0xff]
        %v302 = vlaneseq
        %v303 = vshrl.u32 %v302, 7
        %v304 = vsub.s32 0, %v303
        %v305 = vrot.slane %v289, %v304
        %v307 = vmul.f32 %v293, %v305
        %v308 = vmul.f32 %v294, %v305
        %v309 = vmul.f32 %v295, %v305
        %v310 = vmul.f32 %v296, %v305
        %v311 = vmul.f32 %v297, %v305
        %v312 = vmul.f32 %v298, %v305
        %v313 = vmul.f32 %v299, %v305
        %v314 = vmul.f32 %v300, %v305
        %v316 = vlaneseq
        %v317 = vshrl.u32 %v316, 7
        %v318 = vsub.s32 0, %v317
        %v319 = vrot.slane %v290, %v318
        %v321 = vadd.f32 %v307, %v319
        %v322 = vadd.f32 %v308, %v319
        %v323 = vadd.f32 %v309, %v319
        %v324 = vadd.f32 %v310, %v319
        %v325 = vadd.f32 %v311, %v319
        %v326 = vadd.f32 %v312, %v319
        %v327 = vadd.f32 %v313, %v319
        %v328 = vadd.f32 %v314, %v319
        %v329 = vmax.f32 %v321, 0.0
        %v330 = vmax.f32 %v322, 0.0
        %v331 = vmax.f32 %v323, 0.0
        %v332 = vmax.f32 %v324, 0.0
        %v333 = vmax.f32 %v325, 0.0
        %v334 = vmax.f32 %v326, 0.0
        %v335 = vmax.f32 %v327, 0.0
        %v336 = vmax.f32 %v328, 0.0
        %s337 = ssub.s32 %s291, 16
        %p338 = scmp.gt.s32.totalorder %s337, 0
        %s339 = scalar_select %p338, %s337, 0
        %s340 = sadd.s32 %s291, 64
        %p341 = scmp.lt.s32.totalorder %s340, 240
        %s342 = scalar_select %p341, %s340, 240
        %p343 = scmp.gt.s32.totalorder %s26, 0
        %s344 = scalar_select %p343, 1, 0
        %s345 = scvt.s32.f32 %s344
        %p346 = scmp.lt.s32.totalorder %s26, 3
        %s347 = scalar_select %p346, 1, 0
        %s348 = scvt.s32.f32 %s347
        %s349 = scalar_lea.vmem %s277, %s339
        %v350 = vld [vmem:[%s349] sm:$0xff]
        %v351 = vld [vmem:[%s349 + $0x8] sm:$0xff]
        %v352 = vmul.f32 %v350, %v305
        %v353 = vmul.f32 %v351, %v305
        %v354 = vadd.f32 %v352, %v319
        %v355 = vadd.f32 %v353, %v319
        %v356 = vmax.f32 %v354, 0.0
        %v357 = vmax.f32 %v355, 0.0
        %v358 = vstv %s345
        %v359 = vmul.f32 %v356, %v358
        %v360 = vmul.f32 %v357, %v358
        %s361 = scalar_lea.vmem %s277, %s342
        %v362 = vld [vmem:[%s361] sm:$0xff]
        %v363 = vld [vmem:[%s361 + $0x8] sm:$0xff]
        %v364 = vmul.f32 %v362, %v305
        %v365 = vmul.f32 %v363, %v305
        %v366 = vadd.f32 %v364, %v319
        %v367 = vadd.f32 %v365, %v319
        %v368 = vmax.f32 %v366, 0.0
        %v369 = vmax.f32 %v367, 0.0
        %v370 = vstv %s348
        %v371 = vmul.f32 %v368, %v370
        %v372 = vmul.f32 %v369, %v370
        %v373 = vlaneseq
        %v374 = vshrl.u32 %v373, 7
        %v375 = vadd.s32 %v374, 8
        %v376 = vadd.s32 %v374, 16
        %v377 = vadd.s32 %v374, 24
        %v378 = vadd.s32 %v374, 32
        %v379 = vadd.s32 %v374, 40
        %v380 = vadd.s32 %v374, 48
        %v381 = vadd.s32 %v374, 56
        %v382 = vadd.s32 %v374, 64
        %v383 = vadd.s32 %v374, 72
        %v384 = vadd.s32 %v374, 80
        %v385 = vadd.s32 %v374, 88
        %vm386 = vcmp.lt.s32.totalorder %v374, 0
        %v387 = vsub.s32 0, %v374
        %v388 = vsel %vm386, %v387, %v374
        %v389 = vshrl.u32 %v388, 4
        %v390 = vand.u32 %v388, 15
        %v391 = vsub.s32 0, %v390
        %v392 = vsel %vm386, %v391, %v390
        %vm393 = vcmp.lt.s32.totalorder %v375, 0
        %v394 = vsub.s32 0, %v375
        %v395 = vsel %vm393, %v394, %v375
        %v396 = vshrl.u32 %v395, 4
        %v397 = vand.u32 %v395, 15
        %v398 = vsub.s32 0, %v397
        %v399 = vsel %vm393, %v398, %v397
        %vm400 = vcmp.lt.s32.totalorder %v376, 0
        %v401 = vsub.s32 0, %v376
        %v402 = vsel %vm400, %v401, %v376
        %v403 = vshrl.u32 %v402, 4
        %v404 = vand.u32 %v402, 15
        %v405 = vsub.s32 0, %v404
        %v406 = vsel %vm400, %v405, %v404
        %vm407 = vcmp.lt.s32.totalorder %v377, 0
        %v408 = vsub.s32 0, %v377
        %v409 = vsel %vm407, %v408, %v377
        %v410 = vshrl.u32 %v409, 4
        %v411 = vand.u32 %v409, 15
        %v412 = vsub.s32 0, %v411
        %v413 = vsel %vm407, %v412, %v411
        %vm414 = vcmp.lt.s32.totalorder %v378, 0
        %v415 = vsub.s32 0, %v378
        %v416 = vsel %vm414, %v415, %v378
        %v417 = vshrl.u32 %v416, 4
        %v418 = vand.u32 %v416, 15
        %v419 = vsub.s32 0, %v418
        %v420 = vsel %vm414, %v419, %v418
        %vm421 = vcmp.lt.s32.totalorder %v379, 0
        %v422 = vsub.s32 0, %v379
        %v423 = vsel %vm421, %v422, %v379
        %v424 = vshrl.u32 %v423, 4
        %v425 = vand.u32 %v423, 15
        %v426 = vsub.s32 0, %v425
        %v427 = vsel %vm421, %v426, %v425
        %vm428 = vcmp.lt.s32.totalorder %v380, 0
        %v429 = vsub.s32 0, %v380
        %v430 = vsel %vm428, %v429, %v380
        %v431 = vshrl.u32 %v430, 4
        %v432 = vand.u32 %v430, 15
        %v433 = vsub.s32 0, %v432
        %v434 = vsel %vm428, %v433, %v432
        %vm435 = vcmp.lt.s32.totalorder %v381, 0
        %v436 = vsub.s32 0, %v381
        %v437 = vsel %vm435, %v436, %v381
        %v438 = vshrl.u32 %v437, 4
        %v439 = vand.u32 %v437, 15
        %v440 = vsub.s32 0, %v439
        %v441 = vsel %vm435, %v440, %v439
        %vm442 = vcmp.lt.s32.totalorder %v382, 0
        %v443 = vsub.s32 0, %v382
        %v444 = vsel %vm442, %v443, %v382
        %v445 = vshrl.u32 %v444, 4
        %v446 = vand.u32 %v444, 15
        %v447 = vsub.s32 0, %v446
        %v448 = vsel %vm442, %v447, %v446
        %vm449 = vcmp.lt.s32.totalorder %v383, 0
        %v450 = vsub.s32 0, %v383
        %v451 = vsel %vm449, %v450, %v383
        %v452 = vshrl.u32 %v451, 4
        %v453 = vand.u32 %v451, 15
        %v454 = vsub.s32 0, %v453
        %v455 = vsel %vm449, %v454, %v453
        %vm456 = vcmp.lt.s32.totalorder %v384, 0
        %v457 = vsub.s32 0, %v384
        %v458 = vsel %vm456, %v457, %v384
        %v459 = vshrl.u32 %v458, 4
        %v460 = vand.u32 %v458, 15
        %v461 = vsub.s32 0, %v460
        %v462 = vsel %vm456, %v461, %v460
        %vm463 = vcmp.lt.s32.totalorder %v385, 0
        %v464 = vsub.s32 0, %v385
        %v465 = vsel %vm463, %v464, %v385
        %v466 = vshrl.u32 %v465, 4
        %v467 = vand.u32 %v465, 15
        %v468 = vsub.s32 0, %v467
        %v469 = vsel %vm463, %v468, %v467
        %vm470 = vcmp.ne.s32.totalorder %v392, 0
        %vm471 = vcmp.ne.s32.totalorder %v399, 0
        %vm472 = vcmp.ne.s32.totalorder %v406, 0
        %vm473 = vcmp.ne.s32.totalorder %v413, 0
        %vm474 = vcmp.ne.s32.totalorder %v420, 0
        %vm475 = vcmp.ne.s32.totalorder %v427, 0
        %vm476 = vcmp.ne.s32.totalorder %v434, 0
        %vm477 = vcmp.ne.s32.totalorder %v441, 0
        %vm478 = vcmp.ne.s32.totalorder %v448, 0
        %vm479 = vcmp.ne.s32.totalorder %v455, 0
        %vm480 = vcmp.ne.s32.totalorder %v462, 0
        %vm481 = vcmp.ne.s32.totalorder %v469, 0
        %vm482 = vcmp.lt.s32.totalorder %v392, 0
        %vm483 = vcmp.lt.s32.totalorder %v399, 0
        %vm484 = vcmp.lt.s32.totalorder %v406, 0
        %vm485 = vcmp.lt.s32.totalorder %v413, 0
        %vm486 = vcmp.lt.s32.totalorder %v420, 0
        %vm487 = vcmp.lt.s32.totalorder %v427, 0
        %vm488 = vcmp.lt.s32.totalorder %v434, 0
        %vm489 = vcmp.lt.s32.totalorder %v441, 0
        %vm490 = vcmp.lt.s32.totalorder %v448, 0
        %vm491 = vcmp.lt.s32.totalorder %v455, 0
        %vm492 = vcmp.lt.s32.totalorder %v462, 0
        %vm493 = vcmp.lt.s32.totalorder %v469, 0
        %vm494 = vmand %vm482, %vm470
        %vm495 = vmand %vm483, %vm471
        %vm496 = vmand %vm484, %vm472
        %vm497 = vmand %vm485, %vm473
        %vm498 = vmand %vm486, %vm474
        %vm499 = vmand %vm487, %vm475
        %vm500 = vmand %vm488, %vm476
        %vm501 = vmand %vm489, %vm477
        %vm502 = vmand %vm490, %vm478
        %vm503 = vmand %vm491, %vm479
        %vm504 = vmand %vm492, %vm480
        %vm505 = vmand %vm493, %vm481
        %v506 = vadd.s32 %v392, 16
        %v507 = vadd.s32 %v399, 16
        %v508 = vadd.s32 %v406, 16
        %v509 = vadd.s32 %v413, 16
        %v510 = vadd.s32 %v420, 16
        %v511 = vadd.s32 %v427, 16
        %v512 = vadd.s32 %v434, 16
        %v513 = vadd.s32 %v441, 16
        %v514 = vadd.s32 %v448, 16
        %v515 = vadd.s32 %v455, 16
        %v516 = vadd.s32 %v462, 16
        %v517 = vadd.s32 %v469, 16
        %v518 = vsel %vm494, %v506, %v392
        %v519 = vsel %vm495, %v507, %v399
        %v520 = vsel %vm496, %v508, %v406
        %v521 = vsel %vm497, %v509, %v413
        %v522 = vsel %vm498, %v510, %v420
        %v523 = vsel %vm499, %v511, %v427
        %v524 = vsel %vm500, %v512, %v434
        %v525 = vsel %vm501, %v513, %v441
        %v526 = vsel %vm502, %v514, %v448
        %v527 = vsel %vm503, %v515, %v455
        %v528 = vsel %vm504, %v516, %v462
        %v529 = vsel %vm505, %v517, %v469
        %vm530 = vcmp.eq.s32.totalorder %v518, 0
        %vm531 = vcmp.eq.s32.totalorder %v519, 0
        %vm532 = vcmp.eq.s32.totalorder %v520, 0
        %vm533 = vcmp.eq.s32.totalorder %v521, 0
        %vm534 = vcmp.eq.s32.totalorder %v522, 0
        %vm535 = vcmp.eq.s32.totalorder %v523, 0
        %vm536 = vcmp.eq.s32.totalorder %v524, 0
        %vm537 = vcmp.eq.s32.totalorder %v525, 0
        %vm538 = vcmp.eq.s32.totalorder %v526, 0
        %vm539 = vcmp.eq.s32.totalorder %v527, 0
        %vm540 = vcmp.eq.s32.totalorder %v528, 0
        %vm541 = vcmp.eq.s32.totalorder %v529, 0
        %v542 = vrot.slane %v359, 7
        %v543 = vrot.slane %v360, 7
        %v544 = vrot.slane %v329, 7
        %v545 = vrot.slane %v330, 7
        %v546 = vrot.slane %v331, 7
        %v547 = vrot.slane %v332, 7
        %v548 = vrot.slane %v333, 7
        %v549 = vrot.slane %v334, 7
        %v550 = vrot.slane %v335, 7
        %v551 = vrot.slane %v336, 7
        %v552 = vrot.slane %v371, 7
        %v553 = vrot.slane %v372, 7
        %vm554 = vcmp.lt.s32.totalorder %v374, 1
        %v555 = vsel %vm554, %v552, %v553
        %v556 = vsel %vm554, %v551, %v552
        %v557 = vsel %vm554, %v550, %v551
        %v558 = vsel %vm554, %v549, %v550
        %v559 = vsel %vm554, %v548, %v549
        %v560 = vsel %vm554, %v547, %v548
        %v561 = vsel %vm554, %v546, %v547
        %v562 = vsel %vm554, %v545, %v546
        %v563 = vsel %vm554, %v544, %v545
        %v564 = vsel %vm554, %v543, %v544
        %v565 = vsel %vm554, %v542, %v543
        %v566 = vsel %vm554, %v553, %v542
        %v567 = vsel %vm530, 1, 0
        %v568 = vsel %vm531, 1, 0
        %v569 = vsel %vm532, 1, 0
        %v570 = vsel %vm533, 1, 0
        %v571 = vsel %vm534, 1, 0
        %v572 = vsel %vm535, 1, 0
        %v573 = vsel %vm536, 1, 0
        %v574 = vsel %vm537, 1, 0
        %v575 = vsel %vm538, 1, 0
        %v576 = vsel %vm539, 1, 0
        %v577 = vsel %vm540, 1, 0
        %v578 = vsel %vm541, 1, 0
        %vm579 = vcmp.eq.s32.totalorder %v567, 1
        %vm580 = vcmp.eq.s32.totalorder %v568, 1
        %vm581 = vcmp.eq.s32.totalorder %v569, 1
        %vm582 = vcmp.eq.s32.totalorder %v570, 1
        %vm583 = vcmp.eq.s32.totalorder %v571, 1
        %vm584 = vcmp.eq.s32.totalorder %v572, 1
        %vm585 = vcmp.eq.s32.totalorder %v573, 1
        %vm586 = vcmp.eq.s32.totalorder %v574, 1
        %vm587 = vcmp.eq.s32.totalorder %v575, 1
        %vm588 = vcmp.eq.s32.totalorder %v576, 1
        %vm589 = vcmp.eq.s32.totalorder %v577, 1
        %vm590 = vcmp.eq.s32.totalorder %v578, 1
        %v591 = vsel %vm579, 0.0, %v566
        %v592 = vsel %vm580, 0.0, %v565
        %v593 = vsel %vm581, 0.0, %v564
        %v594 = vsel %vm582, 0.0, %v563
        %v595 = vsel %vm583, 0.0, %v562
        %v596 = vsel %vm584, 0.0, %v561
        %v597 = vsel %vm585, 0.0, %v560
        %v598 = vsel %vm586, 0.0, %v559
        %v599 = vsel %vm587, 0.0, %v558
        %v600 = vsel %vm588, 0.0, %v557
        %v601 = vsel %vm589, 0.0, %v556
        %v602 = vsel %vm590, 0.0, %v555
        %vm603 = vcmp.eq.s32.totalorder %v518, 15
        %vm604 = vcmp.eq.s32.totalorder %v519, 15
        %vm605 = vcmp.eq.s32.totalorder %v520, 15
        %vm606 = vcmp.eq.s32.totalorder %v521, 15
        %vm607 = vcmp.eq.s32.totalorder %v522, 15
        %vm608 = vcmp.eq.s32.totalorder %v523, 15
        %vm609 = vcmp.eq.s32.totalorder %v524, 15
        %vm610 = vcmp.eq.s32.totalorder %v525, 15
        %vm611 = vcmp.eq.s32.totalorder %v526, 15
        %vm612 = vcmp.eq.s32.totalorder %v527, 15
        %vm613 = vcmp.eq.s32.totalorder %v528, 15
        %vm614 = vcmp.eq.s32.totalorder %v529, 15
        %v615 = vrot.slane %v359, 1
        %v616 = vrot.slane %v360, 1
        %v617 = vrot.slane %v329, 1
        %v618 = vrot.slane %v330, 1
        %v619 = vrot.slane %v331, 1
        %v620 = vrot.slane %v332, 1
        %v621 = vrot.slane %v333, 1
        %v622 = vrot.slane %v334, 1
        %v623 = vrot.slane %v335, 1
        %v624 = vrot.slane %v336, 1
        %v625 = vrot.slane %v371, 1
        %v626 = vrot.slane %v372, 1
        %vm627 = vcmp.lt.s32.totalorder %v374, 7
        %v628 = vsel %vm627, %v625, %v626
        %v629 = vsel %vm627, %v624, %v625
        %v630 = vsel %vm627, %v623, %v624
        %v631 = vsel %vm627, %v622, %v623
        %v632 = vsel %vm627, %v621, %v622
        %v633 = vsel %vm627, %v620, %v621
        %v634 = vsel %vm627, %v619, %v620
        %v635 = vsel %vm627, %v618, %v619
        %v636 = vsel %vm627, %v617, %v618
        %v637 = vsel %vm627, %v616, %v617
        %v638 = vsel %vm627, %v615, %v616
        %v639 = vsel %vm627, %v626, %v615
        %v640 = vsel %vm603, 1, 0
        %v641 = vsel %vm604, 1, 0
        %v642 = vsel %vm605, 1, 0
        %v643 = vsel %vm606, 1, 0
        %v644 = vsel %vm607, 1, 0
        %v645 = vsel %vm608, 1, 0
        %v646 = vsel %vm609, 1, 0
        %v647 = vsel %vm610, 1, 0
        %v648 = vsel %vm611, 1, 0
        %v649 = vsel %vm612, 1, 0
        %v650 = vsel %vm613, 1, 0
        %v651 = vsel %vm614, 1, 0
        %vm652 = vcmp.eq.s32.totalorder %v640, 1
        %vm653 = vcmp.eq.s32.totalorder %v641, 1
        %vm654 = vcmp.eq.s32.totalorder %v642, 1
        %vm655 = vcmp.eq.s32.totalorder %v643, 1
        %vm656 = vcmp.eq.s32.totalorder %v644, 1
        %vm657 = vcmp.eq.s32.totalorder %v645, 1
        %vm658 = vcmp.eq.s32.totalorder %v646, 1
        %vm659 = vcmp.eq.s32.totalorder %v647, 1
        %vm660 = vcmp.eq.s32.totalorder %v648, 1
        %vm661 = vcmp.eq.s32.totalorder %v649, 1
        %vm662 = vcmp.eq.s32.totalorder %v650, 1
        %vm663 = vcmp.eq.s32.totalorder %v651, 1
        %v664 = vsel %vm652, 0.0, %v638
        %v665 = vsel %vm653, 0.0, %v637
        %v666 = vsel %vm654, 0.0, %v636
        %v667 = vsel %vm655, 0.0, %v635
        %v668 = vsel %vm656, 0.0, %v634
        %v669 = vsel %vm657, 0.0, %v633
        %v670 = vsel %vm658, 0.0, %v632
        %v671 = vsel %vm659, 0.0, %v631
        %v672 = vsel %vm660, 0.0, %v630
        %v673 = vsel %vm661, 0.0, %v629
        %v674 = vsel %vm662, 0.0, %v628
        %v675 = vsel %vm663, 0.0, %v639
        %v676 = vpack.c.bf16 %v592, %v591
        %v677 = vpack.c.bf16 %v594, %v593
        %v678 = vpack.c.bf16 %v596, %v595
        %v679 = vpack.c.bf16 %v598, %v597
        %v680 = vpack.c.bf16 %v600, %v599
        %v681 = vpack.c.bf16 %v602, %v601
        %v682 = vpack.c.bf16 %v360, %v359
        %v683 = vpack.c.bf16 %v330, %v329
        %v684 = vpack.c.bf16 %v332, %v331
        %v685 = vpack.c.bf16 %v334, %v333
        %v686 = vpack.c.bf16 %v336, %v335
        %v687 = vpack.c.bf16 %v372, %v371
        %v688 = vpack.c.bf16 %v665, %v664
        %v689 = vpack.c.bf16 %v667, %v666
        %v690 = vpack.c.bf16 %v669, %v668
        %v691 = vpack.c.bf16 %v671, %v670
        %v692 = vpack.c.bf16 %v673, %v672
        %v693 = vpack.c.bf16 %v675, %v674
        %vm694 = vcmask 31744
        %695 = vst.msk [vmem:[#allocation2] sm:$0xff] %vm694, %v676
        %696 = vst.msk [vmem:[#allocation2 + $0x8] sm:$0xff] %vm694, %v677
        %697 = vst.msk [vmem:[#allocation2 + $0x10] sm:$0xff] %vm694, %v678
        %698 = vst.msk [vmem:[#allocation2 + $0x18] sm:$0xff] %vm694, %v679
        %703 = vrot.lane.b32.xlu0 %v682, 4
        %v704 = vpop.permute.xlu0 %703
        %705 = vrot.lane.b32.xlu0 %v683, 4
        %v706 = vpop.permute.xlu0 %705
        %707 = vrot.lane.b32.xlu0 %v684, 4
        %v708 = vpop.permute.xlu0 %707
        %709 = vrot.lane.b32.xlu0 %v685, 4
        %v710 = vpop.permute.xlu0 %709
        %vm715 = vcmask 64544
        %716 = vst.msk [vmem:[#allocation2] sm:$0xff] %vm715, %v704
        %717 = vst.msk [vmem:[#allocation2 + $0x8] sm:$0xff] %vm715, %v706
        %718 = vst.msk [vmem:[#allocation2 + $0x10] sm:$0xff] %vm715, %v708
        %719 = vst.msk [vmem:[#allocation2 + $0x18] sm:$0xff] %vm715, %v710
        %724 = vrot.lane.b32.xlu0 %v688, 8
        %v725 = vpop.permute.xlu0 %724
        %726 = vrot.lane.b32.xlu0 %v689, 8
        %v727 = vpop.permute.xlu0 %726
        %728 = vrot.lane.b32.xlu0 %v690, 8
        %v729 = vpop.permute.xlu0 %728
        %730 = vrot.lane.b32.xlu0 %v691, 8
        %v731 = vpop.permute.xlu0 %730
        %vm736 = vcmask 97344
        %737 = vst.msk [vmem:[#allocation2] sm:$0xff] %vm736, %v725
        %738 = vst.msk [vmem:[#allocation2 + $0x8] sm:$0xff] %vm736, %v727
        %739 = vst.msk [vmem:[#allocation2 + $0x10] sm:$0xff] %vm736, %v729
        %740 = vst.msk [vmem:[#allocation2 + $0x18] sm:$0xff] %vm736, %v731
        %745 = vrot.lane.b32.xlu0 %v677, 12
        %v746 = vpop.permute.xlu0 %745
        %747 = vrot.lane.b32.xlu0 %v678, 12
        %v748 = vpop.permute.xlu0 %747
        %749 = vrot.lane.b32.xlu0 %v679, 12
        %v750 = vpop.permute.xlu0 %749
        %751 = vrot.lane.b32.xlu0 %v680, 12
        %v752 = vpop.permute.xlu0 %751
        %vm757 = vcmask 130144
        %758 = vst.msk [vmem:[#allocation2] sm:$0xff] %vm757, %v746
        %759 = vst.msk [vmem:[#allocation2 + $0x8] sm:$0xff] %vm757, %v748
        %760 = vst.msk [vmem:[#allocation2 + $0x10] sm:$0xff] %vm757, %v750
        %761 = vst.msk [vmem:[#allocation2 + $0x18] sm:$0xff] %vm757, %v752
        %763 = vrot.lane.b32.xlu0 %v683, 16
        %v764 = vpop.permute.xlu0 %763
        %765 = vrot.lane.b32.xlu0 %v684, 16
        %v766 = vpop.permute.xlu0 %765
        %767 = vrot.lane.b32.xlu0 %v685, 16
        %v768 = vpop.permute.xlu0 %767
        %769 = vrot.lane.b32.xlu0 %v686, 16
        %v770 = vpop.permute.xlu0 %769
        %vm775 = vcmask 162944
        %776 = vst.msk [vmem:[#allocation2] sm:$0xff] %vm775, %v764
        %777 = vst.msk [vmem:[#allocation2 + $0x8] sm:$0xff] %vm775, %v766
        %778 = vst.msk [vmem:[#allocation2 + $0x10] sm:$0xff] %vm775, %v768
        %779 = vst.msk [vmem:[#allocation2 + $0x18] sm:$0xff] %vm775, %v770
        %781 = vrot.lane.b32.xlu0 %v689, 20
        %v782 = vpop.permute.xlu0 %781
        %783 = vrot.lane.b32.xlu0 %v690, 20
        %v784 = vpop.permute.xlu0 %783
        %785 = vrot.lane.b32.xlu0 %v691, 20
        %v786 = vpop.permute.xlu0 %785
        %787 = vrot.lane.b32.xlu0 %v692, 20
        %v788 = vpop.permute.xlu0 %787
        %vm793 = vcmask 195744
        %794 = vst.msk [vmem:[#allocation2] sm:$0xff] %vm793, %v782
        %795 = vst.msk [vmem:[#allocation2 + $0x8] sm:$0xff] %vm793, %v784
        %796 = vst.msk [vmem:[#allocation2 + $0x10] sm:$0xff] %vm793, %v786
        %797 = vst.msk [vmem:[#allocation2 + $0x18] sm:$0xff] %vm793, %v788
        %799 = vrot.lane.b32.xlu0 %v678, 24
        %v800 = vpop.permute.xlu0 %799
        %801 = vrot.lane.b32.xlu0 %v679, 24
        %v802 = vpop.permute.xlu0 %801
        %803 = vrot.lane.b32.xlu0 %v680, 24
        %v804 = vpop.permute.xlu0 %803
        %805 = vrot.lane.b32.xlu0 %v681, 24
        %v806 = vpop.permute.xlu0 %805
        %vm811 = vcmask 228544
        %812 = vst.msk [vmem:[#allocation2] sm:$0xff] %vm811, %v800
        %813 = vst.msk [vmem:[#allocation2 + $0x8] sm:$0xff] %vm811, %v802
        %814 = vst.msk [vmem:[#allocation2 + $0x10] sm:$0xff] %vm811, %v804
        %815 = vst.msk [vmem:[#allocation2 + $0x18] sm:$0xff] %vm811, %v806
        %817 = vrot.lane.b32.xlu0 %v684, 28
        %v818 = vpop.permute.xlu0 %817
        %819 = vrot.lane.b32.xlu0 %v685, 28
        %v820 = vpop.permute.xlu0 %819
        %821 = vrot.lane.b32.xlu0 %v686, 28
        %v822 = vpop.permute.xlu0 %821
        %823 = vrot.lane.b32.xlu0 %v687, 28
        %v824 = vpop.permute.xlu0 %823
        %vm829 = vcmask 261344
        %830 = vst.msk [vmem:[#allocation2] sm:$0xff] %vm829, %v818
        %831 = vst.msk [vmem:[#allocation2 + $0x8] sm:$0xff] %vm829, %v820
        %832 = vst.msk [vmem:[#allocation2 + $0x10] sm:$0xff] %vm829, %v822
        %833 = vst.msk [vmem:[#allocation2 + $0x18] sm:$0xff] %vm829, %v824
        %835 = vrot.lane.b32.xlu0 %v690, 32
        %v836 = vpop.permute.xlu0 %835
        %837 = vrot.lane.b32.xlu0 %v691, 32
        %v838 = vpop.permute.xlu0 %837
        %839 = vrot.lane.b32.xlu0 %v692, 32
        %v840 = vpop.permute.xlu0 %839
        %841 = vrot.lane.b32.xlu0 %v693, 32
        %v842 = vpop.permute.xlu0 %841
        %vm847 = vcmask 294144
        %848 = vst.msk [vmem:[#allocation2] sm:$0xff] %vm847, %v836
        %849 = vst.msk [vmem:[#allocation2 + $0x8] sm:$0xff] %vm847, %v838
        %850 = vst.msk [vmem:[#allocation2 + $0x10] sm:$0xff] %vm847, %v840
        %851 = vst.msk [vmem:[#allocation2 + $0x18] sm:$0xff] %vm847, %v842
        %v852 = vld [vmem:[#allocation2] sm:$0xff]
        %v853 = vld [vmem:[#allocation2 + $0x8] sm:$0xff]
        %v854 = vld [vmem:[#allocation2 + $0x10] sm:$0xff]
        %v855 = vld [vmem:[#allocation2 + $0x18] sm:$0xff]
        %v856 = vld [vmem:[%s3] sm:$0xf]
        %v857 = vld [vmem:[%s3 + $0x4] sm:$0xf]
        %v858 = vld [vmem:[%s3 + $0x8] sm:$0xf]
        %v859 = vld [vmem:[%s3 + $0xc] sm:$0xf]
        %v860 = vld [vmem:[%s3 + $0x10] sm:$0x3]
        %v861 = vld [vmem:[%s4] sm:$0x1]
        %v863 = vlaneseq
        %v864 = vshrl.u32 %v863, 7
        %v865 = vsub.s32 0, %v864
        %v866 = vrot.slane %v861, %v865
        %v873 = vunpack.c.l.b16 %v856
        %v874 = vunpack.c.l.b16 %v857
        %v875 = vunpack.c.l.b16 %v858
        %v876 = vunpack.c.l.b16 %v859
        %v877 = vunpack.c.l.b16 %v860
        %v878 = vpack.c.b16 %v874, %v873
        %v879 = vpack.c.b16 %v876, %v875
        %v880 = vpack.c.b16 %v877, %v877
        %vm883 = vcmask 293888
        %v885 = vsel %vm883, %v852, 0
        %v888 = vsel %vm883, %v853, 0
        %v891 = vsel %vm883, %v854, 0
        %v894 = vsel %vm883, %v855, 0
        %vm896 = vcmask 1041408
        %v898 = vsel %vm896, %v880, 0
        %900 = vmatprep.subr.bf16.mxu0 0
        %901 = vmatpush1.bf16.msra.mxu0 %v878
        %902 = vmatprep.subr.bf16.mxu0 0
        %903 = vmatpush1.bf16.msra.mxu0 %v879
        %904 = vmatprep.subr.bf16.mxu0 0
        %905 = vmatpush1.bf16.msra.mxu0 %v898
        %906 = vmatprep.subr.bf16.mxu0 0
        %907 = vmatpush1.bf16.msra.mxu0 0
        %908 = vmatprep.subr.bf16.mxu0 0
        %909 = vmatpush1.bf16.msra.mxu0 0
        %910 = vmatprep.subr.bf16.mxu0 0
        %911 = vmatpush1.bf16.msra.mxu0 0
        %912 = vmatprep.subr.bf16.mxu0 0
        %913 = vmatpush1.bf16.msra.mxu0 0
        %914 = vmatprep.subr.bf16.mxu0 0
        %915 = vmatpush1.bf16.msra.mxu0 0
        %916 = vmatprep.subr.bf16.mxu0 0
        %917 = vmatpush1.bf16.msra.mxu0 0
        %918 = vmatprep.subr.bf16.mxu0 0
        %919 = vmatpush1.bf16.msra.mxu0 0
        %920 = vmatprep.subr.bf16.mxu0 0
        %921 = vmatpush1.bf16.msra.mxu0 0
        %922 = vmatprep.subr.bf16.mxu0 0
        %923 = vmatpush1.bf16.msra.mxu0 0
        %924 = vmatprep.subr.bf16.mxu0 0
        %925 = vmatpush1.bf16.msra.mxu0 0
        %926 = vmatprep.subr.bf16.mxu0 0
        %927 = vmatpush1.bf16.msra.mxu0 0
        %928 = vmatprep.subr.bf16.mxu0 0
        %929 = vmatpush1.bf16.msra.mxu0 0
        %930 = vmatprep.subr.bf16.mxu0 0
        %931 = vmatpush1.bf16.msra.mxu0 0
        %932 = vmatprep.mubr.bf16.mxu0 0
        %933 = vmatmul.mubr.bf16.gmra.mrb[0].mxu0 %v885
        %v934 = vpop.f32.mrb[0].mxu0
        %v935 = vadd.f32 %v866, %v934
        %v936 = vpop.f32.mrb[0].mxu0
        %v937 = vpop.f32.mrb[0].mxu0
        %v938 = vadd.f32 %v866, %v937
        %v939 = vpop.f32.mrb[0].mxu0
        %940 = vmatprep.mubr.bf16.mxu0 0
        %941 = vmatmul.mubr.bf16.gmra.mrb[0].mxu0 %v888
        %v942 = vpop.f32.mrb[0].mxu0
        %v943 = vadd.f32 %v866, %v942
        %v944 = vpop.f32.mrb[0].mxu0
        %v945 = vpop.f32.mrb[0].mxu0
        %v946 = vadd.f32 %v866, %v945
        %v947 = vpop.f32.mrb[0].mxu0
        %948 = vmatprep.mubr.bf16.mxu0 0
        %949 = vmatmul.mubr.bf16.gmra.mrb[0].mxu0 %v891
        %v950 = vpop.f32.mrb[0].mxu0
        %v951 = vadd.f32 %v866, %v950
        %v952 = vpop.f32.mrb[0].mxu0
        %v953 = vpop.f32.mrb[0].mxu0
        %v954 = vadd.f32 %v866, %v953
        %v955 = vpop.f32.mrb[0].mxu0
        %956 = vmatprep.mubr.bf16.mxu0 0
        %957 = vmatmul.mubr.bf16.gmra.mrb[0].mxu0 %v894
        %v958 = vpop.f32.mrb[0].mxu0
        %v959 = vadd.f32 %v866, %v958
        %v960 = vpop.f32.mrb[0].mxu0
        %v961 = vpop.f32.mrb[0].mxu0
        %v962 = vadd.f32 %v866, %v961
        %v963 = vpop.f32.mrb[0].mxu0
        %964 = vdwg.mxu0
        %965 = vst.msk [vmem:[%s286] sm:$0xff] %vm694, %v935
        %966 = vst.msk [vmem:[%s286 + $0x8] sm:$0xff] %vm694, %v938
        %967 = vst.msk [vmem:[%s286 + $0x10] sm:$0xff] %vm694, %v943
        %968 = vst.msk [vmem:[%s286 + $0x18] sm:$0xff] %vm694, %v946
        %969 = vst.msk [vmem:[%s286 + $0x20] sm:$0xff] %vm694, %v951
        %970 = vst.msk [vmem:[%s286 + $0x28] sm:$0xff] %vm694, %v954
        %971 = vst.msk [vmem:[%s286 + $0x30] sm:$0xff] %vm694, %v959
        %972 = vst.msk [vmem:[%s286 + $0x38] sm:$0xff] %vm694, %v962
        %v973 = vsel %vm694, %v935, 0.0
        %v974 = vsel %vm694, %v938, 0.0
        %v975 = vadd.f32 %v973, %v974
        %v976 = vsel %vm694, %v943, 0.0
        %v977 = vadd.f32 %v975, %v976
        %v978 = vsel %vm694, %v946, 0.0
        %v979 = vadd.f32 %v977, %v978
        %v980 = vsel %vm694, %v951, 0.0
        %v981 = vadd.f32 %v979, %v980
        %v982 = vsel %vm694, %v954, 0.0
        %v983 = vadd.f32 %v981, %v982
        %v984 = vsel %vm694, %v959, 0.0
        %v985 = vadd.f32 %v983, %v984
        %v986 = vsel %vm694, %v962, 0.0
        %v987 = vadd.f32 %v985, %v986
        %v988 = vrot.slane %v987, 4
        %v989 = vadd.f32 %v987, %v988
        %v990 = vrot.slane %v989, 2
        %v991 = vadd.f32 %v989, %v990
        %v992 = vrot.slane %v991, 1
        %v993 = vadd.f32 %v991, %v992
        %v994 = vmul.f32 %v935, %v935
        %v995 = vmul.f32 %v938, %v938
        %v996 = vmul.f32 %v943, %v943
        %v997 = vmul.f32 %v946, %v946
        %v998 = vmul.f32 %v951, %v951
        %v999 = vmul.f32 %v954, %v954
        %v1000 = vmul.f32 %v959, %v959
        %v1001 = vmul.f32 %v962, %v962
        %v1002 = vsel %vm694, %v994, 0.0
        %v1003 = vsel %vm694, %v995, 0.0
        %v1004 = vadd.f32 %v1002, %v1003
        %v1005 = vsel %vm694, %v996, 0.0
        %v1006 = vadd.f32 %v1004, %v1005
        %v1007 = vsel %vm694, %v997, 0.0
        %v1008 = vadd.f32 %v1006, %v1007
        %v1009 = vsel %vm694, %v998, 0.0
        %v1010 = vadd.f32 %v1008, %v1009
        %v1011 = vsel %vm694, %v999, 0.0
        %v1012 = vadd.f32 %v1010, %v1011
        %v1013 = vsel %vm694, %v1000, 0.0
        %v1014 = vadd.f32 %v1012, %v1013
        %v1015 = vsel %vm694, %v1001, 0.0
        %v1016 = vadd.f32 %v1014, %v1015
        %v1017 = vrot.slane %v1016, 4
        %v1018 = vadd.f32 %v1016, %v1017
        %v1019 = vrot.slane %v1018, 2
        %v1020 = vadd.f32 %v1018, %v1019
        %v1021 = vrot.slane %v1020, 1
        %v1022 = vadd.f32 %v1020, %v1021
        %vm1023 = vcmask 1040384
        %v1024 = vsel %vm1023, %v993, %v1022
        %vm1025 = vcmask 25600
        %1026 = vst.msk [vmem:[%s272] sm:$0x3] %vm1025, %v1024
        %s1027 = smul.u32 8, %s26
        %p1028 = scmp.lt.s32.totalorder %s25, 1
        %s1029 = scalar_select %p1028, %s25, 1
        %p1030 = scmp.lt.s32.totalorder %s1027, 31
        %s1031 = scalar_select %p1030, %s1027, 31
        %s1032 = smul.addr %s1029, 32
        %s1033 = sadd.s32 %s1031, %s1032
        %s1034 = smul.addr %s1033, 8
        %s1035 = scalar_lea.vmem %s5, %s1034
        %s1036 = sand.u32 %s181, 1
        %s1037 = scalar_lea.sflag [#allocation4], %s1036
        %s1038 = sand.u32 %s181, 1
        %s1039 = smul.addr %s1038, 2
        %s1040 = scalar_lea.vmem [#allocation3], %s1039
        // Predicated region
        $region41: #{tpu_custom_call.1} parent=39 // pred_check
          %p1041 = pneg %p163
        $region42: #{tpu_custom_call.1} parent=39 // pred_check_branch
          %1043 = sbr.rel (%p1041) target = $region44
        $region43: #{tpu_custom_call.1} parent=39 // pred_region
          %s1044 = smul.u32 8, %s26
        $region44: #{tpu_custom_call.1} parent=39 // pred_fallthru
          _
        // Predicated region
        $region45: #{tpu_custom_call.1} parent=39 // pred_check
          %p1045 = pneg %p191
        $region46: #{tpu_custom_call.1} parent=39 // pred_check_branch
          %1047 = sbr.rel (%p1045) target = $region48
        $region47: #{tpu_custom_call.1} parent=39 // pred_region
          %s1049 = ssub.s32 32, 32
          %1050 = vsyncadd %s1037, %s1049
          %s1051 = smul.addr %s25, 4
          %s1052 = sadd.s32 %s26, %s1051
          %s1053 = smul.addr %s1052, 32
          %s1054 = scalar_lea.hbm %s6, %s1053
          %s1056 = sshll.u32 %s1040, 4
          %s1057 = int_to_ptr.vmem [resolvable:$true] %s1056
          %1059 = dma.vmem_to_hbm [thread:$0]  %s1057, 32, %s1054, %s1037
        $region48: #{tpu_custom_call.1} parent=39 // pred_fallthru
          _
      $region40: #{tpu_custom_call.1} parent=5 // pred_fallthru
        _
      %p1060 = scmp.le.s32.totalorder 2, %s16
      // Predicated region
      $region49: #{tpu_custom_call.1} parent=5 // pred_check
        %p1061 = pneg %p1060
      $region50: #{tpu_custom_call.1} parent=5 // pred_check_branch
        %1063 = sbr.rel (%p1061) target = $region52
      $region51: #{tpu_custom_call.1} parent=5 // pred_region
        %s1064 = ssub.s32 %s16, 2
        // Predicated region
        $region53: #{tpu_custom_call.1} parent=51 // pred_check
          %p1065 = pneg %p169
        $region54: #{tpu_custom_call.1} parent=51 // pred_check_branch
          %1067 = sbr.rel (%p1065) target = $region56
        $region55: #{tpu_custom_call.1} parent=51 // pred_region
          %s1068 = smul.u32 8, %s28
          %p1069 = scmp.lt.s32.totalorder %s27, 1
          %s1070 = scalar_select %p1069, %s27, 1
          %p1071 = scmp.lt.s32.totalorder %s1068, 31
          %s1072 = scalar_select %p1071, %s1068, 31
          %s1073 = smul.addr %s1070, 32
          %s1074 = sadd.s32 %s1072, %s1073
          %s1075 = smul.addr %s1074, 8
          %s1076 = scalar_lea.vmem %s5, %s1075
        $region56: #{tpu_custom_call.1} parent=51 // pred_fallthru
          _
        // Predicated region
        $region57: #{tpu_custom_call.1} parent=51 // pred_check
          %p1077 = pneg %p197
        $region58: #{tpu_custom_call.1} parent=51 // pred_check_branch
          %1079 = sbr.rel (%p1077) target = $region60
        $region59: #{tpu_custom_call.1} parent=51 // pred_region
          %s1080 = sand.u32 %s182, 1
          %s1081 = scalar_lea.sflag [#allocation4], %s1080
          %s1082 = sand.u32 %s182, 1
          %s1083 = smul.addr %s1082, 2
          %s1084 = scalar_lea.vmem [#allocation3], %s1083
          %1085 = dma.done %s1081, 32
        $region60: #{tpu_custom_call.1} parent=51 // pred_fallthru
          _
      $region52: #{tpu_custom_call.1} parent=5 // pred_fallthru
        _
    $region6: #{tpu_custom_call.1} parent=1 // loop_footer
      %s20 = sadd.s32 1, %s16
    $region7: #{tpu_custom_call.1} parent=1 // loop_footer_branch
      %15 = sbr.rel target = $region3
    $region8: #{tpu_custom_call.1} parent=1 // loop_exit
      _
    %1086 = vsyncpa [#allocation4], 1
    %s1087 = scalar_lea.sflag [#allocation4], 1
    %1088 = vsyncpa %s1087, 1

// kernel: tpu_custom_call.1
$region0: #{tpu_custom_call.1}
  #allocation0 [shape = 'u32[]', space=smem, size = 0x4, offset = 0x4, fixed_abs, tag = 'smem constant byte address 0x4 - core index']
  #allocation1 [shape = 'u32[144,128]{1,0:T(1,128)}', space=vmem, size = 0x12000, scoped, tag = 'internal scratch']
  #allocation2 [shape = 'bf16[64,36]{1,0:T(16,128)(2,1)}', space=vmem, size = 0x4000, scoped, tag = 'scratch operand']
  %s0 = inlined_call_operand.vmem [shape: f32[2,256,4], index: 0, kind: input, shape index: {}]
  %s1 = inlined_call_operand.vmem [shape: f32[1,4], index: 1, kind: input, shape index: {}]
  %s2 = inlined_call_operand.vmem [shape: f32[1,4], index: 2, kind: input, shape index: {}]
  %s3 = inlined_call_operand.vmem [shape: bf16[36,4], index: 3, kind: input, shape index: {}]
  %s4 = inlined_call_operand.vmem [shape: f32[1,4], index: 4, kind: input, shape index: {}]
  %s5 = inlined_call_operand.vmem [shape: f32[2,256,4], index: 5, kind: output, shape index: {0}]
  %s6 = inlined_call_operand.hbm [shape: f32[2,4,2,4], index: 6, kind: output, shape index: {1}]
  %7 = xla_tuple %s5, %s6
  %s8 = sld [smem:[#allocation0]]
  $region61: #{tpu_custom_call.1} parent=0
    _
  %s10 = ssub.s32 1, %s8
  %s11 = scalar_select 0, %s10, %s8
  $region1: #{tpu_custom_call.1} parent=0
    #allocation3 [shape = 'u8[2048]{0}', space=vmem, size = 0x800, scoped, tag = 'output window, operand 1']
    #allocation4 [shape = 's32[2]{0}', space=sflag, size = 0x8, scoped, tag = 'scoped memory for tpu_custom_call.1']
    %12 = vsyncpa [#allocation4], 0
    %s13 = scalar_lea.sflag [#allocation4], 1
    %14 = vsyncpa %s13, 0
    loop: start=0, step=1, limit=10
    $region2: #{tpu_custom_call.1} parent=1 // loop_pre_header
      _
    $region3: #{tpu_custom_call.1} parent=1 // loop_header
      %s16 = sphi 0, %s20
      %p17 = scmp.ge.s32.totalorder %s16, 10
      %s23 = sphi 0, %s35
      %s24 = sphi 0, %s31
      %s25 = sphi 0, %s23
      %s26 = sphi 0, %s24
      %s27 = sphi 0, %s25
      %s28 = sphi 0, %s26
      %s38 = sphi 0, %s40
      %s41 = sphi 0, %s38
      %s42 = sphi 0, %s41
      %s58 = sphi 0, %s42
      %s62 = sphi 0, %s62
      %s64 = sphi 0, %s62
      %s65 = sphi 0, %s64
      %s79 = sphi 0, %s65
      %s83 = sphi 0, %s83
      %s85 = sphi 0, %s83
      %s86 = sphi 0, %s85
      %s100 = sphi 0, %s86
      %s104 = sphi 0, %s104
      %s106 = sphi 0, %s104
      %s107 = sphi 0, %s106
      %s121 = sphi 0, %s107
      %s125 = sphi 0, %s125
      %s127 = sphi 0, %s125
      %s128 = sphi 0, %s127
      %s142 = sphi 0, %s128
      %s150 = sphi 0, %s152
      %s153 = sphi 0, %s150
      %s154 = sphi 0, %s153
      %s170 = sphi 0, %s154
      %s178 = sphi 0, %s180
      %s181 = sphi 0, %s178
      %s182 = sphi 0, %s181
      %s198 = sphi 0, %s182
    $region4: #{tpu_custom_call.1} parent=1 // loop_header_branch
      %19 = sbr.rel (%p17) target = $region8
    $region5: #{tpu_custom_call.1} parent=1 // loop_body
      %s21 = ssub.s32 %s16, 1
      %s22 = ssub.s32 %s16, 2
      %s29 = sadd.s32 1, %s24
      %p30 = scmp.ge.s32.totalorder %s29, 4
      %s31 = scalar_select %p30, 0, %s29
      %s32 = sadd.s32 1, %s23
      %s33 = scalar_select %p30, %s32, %s23
      %p34 = scmp.ge.s32.totalorder %s33, 2
      %s35 = scalar_select %p34, 0, %s33
      %s36 = ssub.s32 %s23, %s35
      %p37 = scmp.eq.s32.totalorder %s36, 0
      %s39 = sadd.s32 %s38, 1
      %s40 = scalar_select %p37, %s38, %s39
      %p43 = pneg %p37
      %p44 = scmp.eq.s32.totalorder %s16, 7
      %p45 = por %p43, %p44
      %p46 = scmp.ne.s32.totalorder %s38, %s41
      %p47 = scmp.eq.s32.totalorder %s16, 0
      %p48 = por %p46, %p47
      %p49 = scmp.ne.s32.totalorder %s38, %s41
      %p50 = scmp.eq.s32.totalorder %s21, 7
      %p51 = por %p49, %p50
      %p52 = scmp.ne.s32.totalorder %s41, %s42
      %p53 = scmp.eq.s32.totalorder %s21, 0
      %p54 = por %p52, %p53
      %p55 = scmp.ne.s32.totalorder %s41, %s42
      %p56 = scmp.eq.s32.totalorder %s22, 7
      %p57 = por %p55, %p56
      %p59 = scmp.ne.s32.totalorder %s42, %s58
      %p60 = scmp.eq.s32.totalorder %s22, 0
      %p61 = por %p59, %p60
      %s63 = sadd.s32 %s62, 1
      %p66 = scmp.eq.s32.totalorder %s16, 7
      %p67 = scmp.ne.s32.totalorder %s62, %s64
      %p68 = scmp.eq.s32.totalorder %s16, 0
      %p69 = por %p67, %p68
      %p70 = scmp.ne.s32.totalorder %s62, %s64
      %p71 = scmp.eq.s32.totalorder %s21, 7
      %p72 = por %p70, %p71
      %p73 = scmp.ne.s32.totalorder %s64, %s65
      %p74 = scmp.eq.s32.totalorder %s21, 0
      %p75 = por %p73, %p74
      %p76 = scmp.ne.s32.totalorder %s64, %s65
      %p77 = scmp.eq.s32.totalorder %s22, 7
      %p78 = por %p76, %p77
      %p80 = scmp.ne.s32.totalorder %s65, %s79
      %p81 = scmp.eq.s32.totalorder %s22, 0
      %p82 = por %p80, %p81
      %s84 = sadd.s32 %s83, 1
      %p87 = scmp.eq.s32.totalorder %s16, 7
      %p88 = scmp.ne.s32.totalorder %s83, %s85
      %p89 = scmp.eq.s32.totalorder %s16, 0
      %p90 = por %p88, %p89
      %p91 = scmp.ne.s32.totalorder %s83, %s85
      %p92 = scmp.eq.s32.totalorder %s21, 7
      %p93 = por %p91, %p92
      %p94 = scmp.ne.s32.totalorder %s85, %s86
      %p95 = scmp.eq.s32.totalorder %s21, 0
      %p96 = por %p94, %p95
      %p97 = scmp.ne.s32.totalorder %s85, %s86
      %p98 = scmp.eq.s32.totalorder %s22, 7
      %p99 = por %p97, %p98
      %p101 = scmp.ne.s32.totalorder %s86, %s100
      %p102 = scmp.eq.s32.totalorder %s22, 0
      %p103 = por %p101, %p102
      %s105 = sadd.s32 %s104, 1
      %p108 = scmp.eq.s32.totalorder %s16, 7
      %p109 = scmp.ne.s32.totalorder %s104, %s106
      %p110 = scmp.eq.s32.totalorder %s16, 0
      %p111 = por %p109, %p110
      %p112 = scmp.ne.s32.totalorder %s104, %s106
      %p113 = scmp.eq.s32.totalorder %s21, 7
      %p114 = por %p112, %p113
      %p115 = scmp.ne.s32.totalorder %s106, %s107
      %p116 = scmp.eq.s32.totalorder %s21, 0
      %p117 = por %p115, %p116
      %p118 = scmp.ne.s32.totalorder %s106, %s107
      %p119 = scmp.eq.s32.totalorder %s22, 7
      %p120 = por %p118, %p119
      %p122 = scmp.ne.s32.totalorder %s107, %s121
      %p123 = scmp.eq.s32.totalorder %s22, 0
      %p124 = por %p122, %p123
      %s126 = sadd.s32 %s125, 1
      %p129 = scmp.eq.s32.totalorder %s16, 7
      %p130 = scmp.ne.s32.totalorder %s125, %s127
      %p131 = scmp.eq.s32.totalorder %s16, 0
      %p132 = por %p130, %p131
      %p133 = scmp.ne.s32.totalorder %s125, %s127
      %p134 = scmp.eq.s32.totalorder %s21, 7
      %p135 = por %p133, %p134
      %p136 = scmp.ne.s32.totalorder %s127, %s128
      %p137 = scmp.eq.s32.totalorder %s21, 0
      %p138 = por %p136, %p137
      %p139 = scmp.ne.s32.totalorder %s127, %s128
      %p140 = scmp.eq.s32.totalorder %s22, 7
      %p141 = por %p139, %p140
      %p143 = scmp.ne.s32.totalorder %s128, %s142
      %p144 = scmp.eq.s32.totalorder %s22, 0
      %p145 = por %p143, %p144
      %s146 = ssub.s32 %s23, %s35
      %s147 = ssub.s32 %s24, %s31
      %s148 = sor.u32 %s146, %s147
      %p149 = scmp.eq.s32.totalorder %s148, 0
      %s151 = sadd.s32 %s150, 1
      %s152 = scalar_select %p149, %s150, %s151
      %p155 = pneg %p149
      %p156 = scmp.eq.s32.totalorder %s16, 7
      %p157 = por %p155, %p156
      %p158 = scmp.ne.s32.totalorder %s150, %s153
      %p159 = scmp.eq.s32.totalorder %s16, 0
      %p160 = por %p158, %p159
      %p161 = scmp.ne.s32.totalorder %s150, %s153
      %p162 = scmp.eq.s32.totalorder %s21, 7
      %p163 = por %p161, %p162
      %p164 = scmp.ne.s32.totalorder %s153, %s154
      %p165 = scmp.eq.s32.totalorder %s21, 0
      %p166 = por %p164, %p165
      %p167 = scmp.ne.s32.totalorder %s153, %s154
      %p168 = scmp.eq.s32.totalorder %s22, 7
      %p169 = por %p167, %p168
      %p171 = scmp.ne.s32.totalorder %s154, %s170
      %p172 = scmp.eq.s32.totalorder %s22, 0
      %p173 = por %p171, %p172
      %s174 = ssub.s32 %s23, %s35
      %s175 = ssub.s32 %s24, %s31
      %s176 = sor.u32 %s174, %s175
      %p177 = scmp.eq.s32.totalorder %s176, 0
      %s179 = sadd.s32 %s178, 1
      %s180 = scalar_select %p177, %s178, %s179
      %p183 = pneg %p177
      %p184 = scmp.eq.s32.totalorder %s16, 7
      %p185 = por %p183, %p184
      %p186 = scmp.ne.s32.totalorder %s178, %s181
      %p187 = scmp.eq.s32.totalorder %s16, 0
      %p188 = por %p186, %p187
      %p189 = scmp.ne.s32.totalorder %s178, %s181
      %p190 = scmp.eq.s32.totalorder %s21, 7
      %p191 = por %p189, %p190
      %p192 = scmp.ne.s32.totalorder %s181, %s182
      %p193 = scmp.eq.s32.totalorder %s21, 0
      %p194 = por %p192, %p193
      %p195 = scmp.ne.s32.totalorder %s181, %s182
      %p196 = scmp.eq.s32.totalorder %s22, 7
      %p197 = por %p195, %p196
      %p199 = scmp.ne.s32.totalorder %s182, %s198
      %p200 = scmp.eq.s32.totalorder %s22, 0
      %p201 = por %p199, %p200
      %p202 = scmp.le.s32.totalorder 1, %s16
      %p203 = scmp.lt.s32.totalorder %s16, 9
      %p204 = pnand %p202, %p203
      %p205 = pneg %p204
      // Predicated region
      $region9: #{tpu_custom_call.1} parent=5 // pred_check
        _
      $region10: #{tpu_custom_call.1} parent=5 // pred_check_branch
        %207 = sbr.rel (%p204) target = $region12
      $region11: #{tpu_custom_call.1} parent=5 // pred_region
        %s208 = ssub.s32 %s16, 1
        // Predicated region
        $region13: #{tpu_custom_call.1} parent=11 // pred_check
          %p209 = pneg %p75
        $region14: #{tpu_custom_call.1} parent=11 // pred_check_branch
          %211 = sbr.rel (%p209) target = $region16
        $region15: #{tpu_custom_call.1} parent=11 // pred_region
          _
        $region16: #{tpu_custom_call.1} parent=11 // pred_fallthru
          _
        // Predicated region
        $region17: #{tpu_custom_call.1} parent=11 // pred_check
          %p212 = pneg %p96
        $region18: #{tpu_custom_call.1} parent=11 // pred_check_branch
          %214 = sbr.rel (%p212) target = $region20
        $region19: #{tpu_custom_call.1} parent=11 // pred_region
          _
        $region20: #{tpu_custom_call.1} parent=11 // pred_fallthru
          _
        // Predicated region
        $region21: #{tpu_custom_call.1} parent=11 // pred_check
          %p215 = pneg %p117
        $region22: #{tpu_custom_call.1} parent=11 // pred_check_branch
          %217 = sbr.rel (%p215) target = $region24
        $region23: #{tpu_custom_call.1} parent=11 // pred_region
          _
        $region24: #{tpu_custom_call.1} parent=11 // pred_fallthru
          _
        // Predicated region
        $region25: #{tpu_custom_call.1} parent=11 // pred_check
          %p218 = pneg %p138
        $region26: #{tpu_custom_call.1} parent=11 // pred_check_branch
          %220 = sbr.rel (%p218) target = $region28
        $region27: #{tpu_custom_call.1} parent=11 // pred_region
          _
        $region28: #{tpu_custom_call.1} parent=11 // pred_fallthru
          _
      $region12: #{tpu_custom_call.1} parent=5 // pred_fallthru
        _
      %p221 = scmp.lt.s32.totalorder %s16, 8
      // Predicated region
      $region29: #{tpu_custom_call.1} parent=5 // pred_check
        %p222 = pneg %p221
      $region30: #{tpu_custom_call.1} parent=5 // pred_check_branch
        %224 = sbr.rel (%p222) target = $region32
      $region31: #{tpu_custom_call.1} parent=5 // pred_region
        // Predicated region
        $region33: #{tpu_custom_call.1} parent=31 // pred_check
          %p225 = pneg %p48
        $region34: #{tpu_custom_call.1} parent=31 // pred_check_branch
          %227 = sbr.rel (%p225) target = $region36
        $region35: #{tpu_custom_call.1} parent=31 // pred_region
          %p228 = scmp.lt.s32.totalorder %s23, 1
          %s229 = scalar_select %p228, %s23, 1
          %s230 = smul.addr %s229, 32
          %s231 = smul.addr %s230, 8
          %s232 = scalar_lea.vmem %s0, %s231
        $region36: #{tpu_custom_call.1} parent=31 // pred_fallthru
          _
      $region32: #{tpu_custom_call.1} parent=5 // pred_fallthru
        _
      %p233 = scmp.le.s32.totalorder 1, %s16
      %p234 = scmp.lt.s32.totalorder %s16, 9
      %p235 = pnand %p233, %p234
      %p236 = pneg %p235
      // Predicated region
      $region37: #{tpu_custom_call.1} parent=5 // pred_check
        _
      $region38: #{tpu_custom_call.1} parent=5 // pred_check_branch
        %238 = sbr.rel (%p235) target = $region40
      $region39: #{tpu_custom_call.1} parent=5 // pred_region
        %s239 = ssub.s32 %s16, 1
        %p240 = scmp.lt.s32.totalorder %s25, 1
        %s241 = scalar_select %p240, %s25, 1
        %s242 = smul.addr %s241, 32
        %s243 = smul.addr %s242, 8
        %s244 = scalar_lea.vmem %s0, %s243
        %p245 = pneg %p54
        %p246 = pneg %p51
        %p247 = pneg %p75
        %p248 = pneg %p72
        %p249 = pneg %p96
        %p250 = pneg %p93
        %p251 = pneg %p117
        %p252 = pneg %p114
        %p253 = pneg %p138
        %p254 = pneg %p135
        %p255 = pneg %p166
        %p256 = pneg %p163
        %s257 = smul.u32 8, %s26
        %p258 = scmp.lt.s32.totalorder %s25, 1
        %s259 = scalar_select %p258, %s25, 1
        %p260 = scmp.lt.s32.totalorder %s257, 31
        %s261 = scalar_select %p260, %s257, 31
        %s262 = smul.addr %s259, 32
        %s263 = sadd.s32 %s261, %s262
        %s264 = smul.addr %s263, 8
        %s265 = scalar_lea.vmem %s5, %s264
        %p266 = pneg %p194
        %p267 = pneg %p191
        %s268 = sand.u32 %s181, 1
        %s269 = scalar_lea.sflag [#allocation4], %s268
        %s270 = sand.u32 %s181, 1
        %s271 = smul.addr %s270, 2
        %s272 = scalar_lea.vmem [#allocation3], %s271
        %p273 = scmp.lt.s32.totalorder %s25, 1
        %s274 = scalar_select %p273, %s25, 1
        %s275 = smul.addr %s274, 32
        %s276 = smul.addr %s275, 8
        %s277 = scalar_lea.vmem %s0, %s276
        %s278 = smul.u32 8, %s26
        %p279 = scmp.lt.s32.totalorder %s25, 1
        %s280 = scalar_select %p279, %s25, 1
        %p281 = scmp.lt.s32.totalorder %s278, 31
        %s282 = scalar_select %p281, %s278, 31
        %s283 = smul.addr %s280, 32
        %s284 = sadd.s32 %s282, %s283
        %s285 = smul.addr %s284, 8
        %s286 = scalar_lea.vmem %s5, %s285
        %s287 = smul.u32 8, %s26
        %v289 = vld [vmem:[%s1] sm:$0x1]
        %v290 = vld [vmem:[%s2] sm:$0x1]
        %s291 = smul.u32 %s26, 64
        %s292 = scalar_lea.vmem %s277, %s291
        %v293 = vld [vmem:[%s292] sm:$0xff]
        %v294 = vld [vmem:[%s292 + $0x8] sm:$0xff]
        %v295 = vld [vmem:[%s292 + $0x10] sm:$0xff]
        %v296 = vld [vmem:[%s292 + $0x18] sm:$0xff]
        %v297 = vld [vmem:[%s292 + $0x20] sm:$0xff]
        %v298 = vld [vmem:[%s292 + $0x28] sm:$0xff]
        %v299 = vld [vmem:[%s292 + $0x30] sm:$0xff]
        %v300 = vld [vmem:[%s292 + $0x38] sm:$0xff]
        %v302 = vlaneseq
        %v303 = vshrl.u32 %v302, 7
        %v304 = vsub.s32 0, %v303
        %v305 = vrot.slane %v289, %v304
        %v307 = vmul.f32 %v293, %v305
        %v308 = vmul.f32 %v294, %v305
        %v309 = vmul.f32 %v295, %v305
        %v310 = vmul.f32 %v296, %v305
        %v311 = vmul.f32 %v297, %v305
        %v312 = vmul.f32 %v298, %v305
        %v313 = vmul.f32 %v299, %v305
        %v314 = vmul.f32 %v300, %v305
        %v316 = vlaneseq
        %v317 = vshrl.u32 %v316, 7
        %v318 = vsub.s32 0, %v317
        %v319 = vrot.slane %v290, %v318
        %v321 = vadd.f32 %v307, %v319
        %v322 = vadd.f32 %v308, %v319
        %v323 = vadd.f32 %v309, %v319
        %v324 = vadd.f32 %v310, %v319
        %v325 = vadd.f32 %v311, %v319
        %v326 = vadd.f32 %v312, %v319
        %v327 = vadd.f32 %v313, %v319
        %v328 = vadd.f32 %v314, %v319
        %v329 = vmax.f32 %v321, 0.0
        %v330 = vmax.f32 %v322, 0.0
        %v331 = vmax.f32 %v323, 0.0
        %v332 = vmax.f32 %v324, 0.0
        %v333 = vmax.f32 %v325, 0.0
        %v334 = vmax.f32 %v326, 0.0
        %v335 = vmax.f32 %v327, 0.0
        %v336 = vmax.f32 %v328, 0.0
        %s337 = ssub.s32 %s291, 16
        %p338 = scmp.gt.s32.totalorder %s337, 0
        %s339 = scalar_select %p338, %s337, 0
        %s340 = sadd.s32 %s291, 64
        %p341 = scmp.lt.s32.totalorder %s340, 240
        %s342 = scalar_select %p341, %s340, 240
        %p343 = scmp.gt.s32.totalorder %s26, 0
        %s344 = scalar_select %p343, 1, 0
        %s345 = scvt.s32.f32 %s344
        %p346 = scmp.lt.s32.totalorder %s26, 3
        %s347 = scalar_select %p346, 1, 0
        %s348 = scvt.s32.f32 %s347
        %s349 = scalar_lea.vmem %s277, %s339
        %v350 = vld [vmem:[%s349] sm:$0xff]
        %v351 = vld [vmem:[%s349 + $0x8] sm:$0xff]
        %v352 = vmul.f32 %v350, %v305
        %v353 = vmul.f32 %v351, %v305
        %v354 = vadd.f32 %v352, %v319
        %v355 = vadd.f32 %v353, %v319
        %v356 = vmax.f32 %v354, 0.0
        %v357 = vmax.f32 %v355, 0.0
        %v358 = vstv %s345
        %v359 = vmul.f32 %v356, %v358
        %v360 = vmul.f32 %v357, %v358
        %s361 = scalar_lea.vmem %s277, %s342
        %v362 = vld [vmem:[%s361] sm:$0xff]
        %v363 = vld [vmem:[%s361 + $0x8] sm:$0xff]
        %v364 = vmul.f32 %v362, %v305
        %v365 = vmul.f32 %v363, %v305
        %v366 = vadd.f32 %v364, %v319
        %v367 = vadd.f32 %v365, %v319
        %v368 = vmax.f32 %v366, 0.0
        %v369 = vmax.f32 %v367, 0.0
        %v370 = vstv %s348
        %v371 = vmul.f32 %v368, %v370
        %v372 = vmul.f32 %v369, %v370
        %v373 = vlaneseq
        %v374 = vshrl.u32 %v373, 7
        %v375 = vadd.s32 %v374, 8
        %v376 = vadd.s32 %v374, 16
        %v377 = vadd.s32 %v374, 24
        %v378 = vadd.s32 %v374, 32
        %v379 = vadd.s32 %v374, 40
        %v380 = vadd.s32 %v374, 48
        %v381 = vadd.s32 %v374, 56
        %v382 = vadd.s32 %v374, 64
        %v383 = vadd.s32 %v374, 72
        %v384 = vadd.s32 %v374, 80
        %v385 = vadd.s32 %v374, 88
        %vm386 = vcmp.lt.s32.totalorder %v374, 0
        %v387 = vsub.s32 0, %v374
        %v388 = vsel %vm386, %v387, %v374
        %v389 = vshrl.u32 %v388, 4
        %v390 = vand.u32 %v388, 15
        %v391 = vsub.s32 0, %v390
        %v392 = vsel %vm386, %v391, %v390
        %vm393 = vcmp.lt.s32.totalorder %v375, 0
        %v394 = vsub.s32 0, %v375
        %v395 = vsel %vm393, %v394, %v375
        %v396 = vshrl.u32 %v395, 4
        %v397 = vand.u32 %v395, 15
        %v398 = vsub.s32 0, %v397
        %v399 = vsel %vm393, %v398, %v397
        %vm400 = vcmp.lt.s32.totalorder %v376, 0
        %v401 = vsub.s32 0, %v376
        %v402 = vsel %vm400, %v401, %v376
        %v403 = vshrl.u32 %v402, 4
        %v404 = vand.u32 %v402, 15
        %v405 = vsub.s32 0, %v404
        %v406 = vsel %vm400, %v405, %v404
        %vm407 = vcmp.lt.s32.totalorder %v377, 0
        %v408 = vsub.s32 0, %v377
        %v409 = vsel %vm407, %v408, %v377
        %v410 = vshrl.u32 %v409, 4
        %v411 = vand.u32 %v409, 15
        %v412 = vsub.s32 0, %v411
        %v413 = vsel %vm407, %v412, %v411
        %vm414 = vcmp.lt.s32.totalorder %v378, 0
        %v415 = vsub.s32 0, %v378
        %v416 = vsel %vm414, %v415, %v378
        %v417 = vshrl.u32 %v416, 4
        %v418 = vand.u32 %v416, 15
        %v419 = vsub.s32 0, %v418
        %v420 = vsel %vm414, %v419, %v418
        %vm421 = vcmp.lt.s32.totalorder %v379, 0
        %v422 = vsub.s32 0, %v379
        %v423 = vsel %vm421, %v422, %v379
        %v424 = vshrl.u32 %v423, 4
        %v425 = vand.u32 %v423, 15
        %v426 = vsub.s32 0, %v425
        %v427 = vsel %vm421, %v426, %v425
        %vm428 = vcmp.lt.s32.totalorder %v380, 0
        %v429 = vsub.s32 0, %v380
        %v430 = vsel %vm428, %v429, %v380
        %v431 = vshrl.u32 %v430, 4
        %v432 = vand.u32 %v430, 15
        %v433 = vsub.s32 0, %v432
        %v434 = vsel %vm428, %v433, %v432
        %vm435 = vcmp.lt.s32.totalorder %v381, 0
        %v436 = vsub.s32 0, %v381
        %v437 = vsel %vm435, %v436, %v381
        %v438 = vshrl.u32 %v437, 4
        %v439 = vand.u32 %v437, 15
        %v440 = vsub.s32 0, %v439
        %v441 = vsel %vm435, %v440, %v439
        %vm442 = vcmp.lt.s32.totalorder %v382, 0
        %v443 = vsub.s32 0, %v382
        %v444 = vsel %vm442, %v443, %v382
        %v445 = vshrl.u32 %v444, 4
        %v446 = vand.u32 %v444, 15
        %v447 = vsub.s32 0, %v446
        %v448 = vsel %vm442, %v447, %v446
        %vm449 = vcmp.lt.s32.totalorder %v383, 0
        %v450 = vsub.s32 0, %v383
        %v451 = vsel %vm449, %v450, %v383
        %v452 = vshrl.u32 %v451, 4
        %v453 = vand.u32 %v451, 15
        %v454 = vsub.s32 0, %v453
        %v455 = vsel %vm449, %v454, %v453
        %vm456 = vcmp.lt.s32.totalorder %v384, 0
        %v457 = vsub.s32 0, %v384
        %v458 = vsel %vm456, %v457, %v384
        %v459 = vshrl.u32 %v458, 4
        %v460 = vand.u32 %v458, 15
        %v461 = vsub.s32 0, %v460
        %v462 = vsel %vm456, %v461, %v460
        %vm463 = vcmp.lt.s32.totalorder %v385, 0
        %v464 = vsub.s32 0, %v385
        %v465 = vsel %vm463, %v464, %v385
        %v466 = vshrl.u32 %v465, 4
        %v467 = vand.u32 %v465, 15
        %v468 = vsub.s32 0, %v467
        %v469 = vsel %vm463, %v468, %v467
        %vm470 = vcmp.ne.s32.totalorder %v392, 0
        %vm471 = vcmp.ne.s32.totalorder %v399, 0
        %vm472 = vcmp.ne.s32.totalorder %v406, 0
        %vm473 = vcmp.ne.s32.totalorder %v413, 0
        %vm474 = vcmp.ne.s32.totalorder %v420, 0
        %vm475 = vcmp.ne.s32.totalorder %v427, 0
        %vm476 = vcmp.ne.s32.totalorder %v434, 0
        %vm477 = vcmp.ne.s32.totalorder %v441, 0
        %vm478 = vcmp.ne.s32.totalorder %v448, 0
        %vm479 = vcmp.ne.s32.totalorder %v455, 0
        %vm480 = vcmp.ne.s32.totalorder %v462, 0
        %vm481 = vcmp.ne.s32.totalorder %v469, 0
        %vm482 = vcmp.lt.s32.totalorder %v392, 0
        %vm483 = vcmp.lt.s32.totalorder %v399, 0
        %vm484 = vcmp.lt.s32.totalorder %v406, 0
        %vm485 = vcmp.lt.s32.totalorder %v413, 0
        %vm486 = vcmp.lt.s32.totalorder %v420, 0
        %vm487 = vcmp.lt.s32.totalorder %v427, 0
        %vm488 = vcmp.lt.s32.totalorder %v434, 0
        %vm489 = vcmp.lt.s32.totalorder %v441, 0
        %vm490 = vcmp.lt.s32.totalorder %v448, 0
        %vm491 = vcmp.lt.s32.totalorder %v455, 0
        %vm492 = vcmp.lt.s32.totalorder %v462, 0
        %vm493 = vcmp.lt.s32.totalorder %v469, 0
        %vm494 = vmand %vm482, %vm470
        %vm495 = vmand %vm483, %vm471
        %vm496 = vmand %vm484, %vm472
        %vm497 = vmand %vm485, %vm473
        %vm498 = vmand %vm486, %vm474
        %vm499 = vmand %vm487, %vm475
        %vm500 = vmand %vm488, %vm476
        %vm501 = vmand %vm489, %vm477
        %vm502 = vmand %vm490, %vm478
        %vm503 = vmand %vm491, %vm479
        %vm504 = vmand %vm492, %vm480
        %vm505 = vmand %vm493, %vm481
        %v506 = vadd.s32 %v392, 16
        %v507 = vadd.s32 %v399, 16
        %v508 = vadd.s32 %v406, 16
        %v509 = vadd.s32 %v413, 16
        %v510 = vadd.s32 %v420, 16
        %v511 = vadd.s32 %v427, 16
        %v512 = vadd.s32 %v434, 16
        %v513 = vadd.s32 %v441, 16
        %v514 = vadd.s32 %v448, 16
        %v515 = vadd.s32 %v455, 16
        %v516 = vadd.s32 %v462, 16
        %v517 = vadd.s32 %v469, 16
        %v518 = vsel %vm494, %v506, %v392
        %v519 = vsel %vm495, %v507, %v399
        %v520 = vsel %vm496, %v508, %v406
        %v521 = vsel %vm497, %v509, %v413
        %v522 = vsel %vm498, %v510, %v420
        %v523 = vsel %vm499, %v511, %v427
        %v524 = vsel %vm500, %v512, %v434
        %v525 = vsel %vm501, %v513, %v441
        %v526 = vsel %vm502, %v514, %v448
        %v527 = vsel %vm503, %v515, %v455
        %v528 = vsel %vm504, %v516, %v462
        %v529 = vsel %vm505, %v517, %v469
        %vm530 = vcmp.eq.s32.totalorder %v518, 0
        %vm531 = vcmp.eq.s32.totalorder %v519, 0
        %vm532 = vcmp.eq.s32.totalorder %v520, 0
        %vm533 = vcmp.eq.s32.totalorder %v521, 0
        %vm534 = vcmp.eq.s32.totalorder %v522, 0
        %vm535 = vcmp.eq.s32.totalorder %v523, 0
        %vm536 = vcmp.eq.s32.totalorder %v524, 0
        %vm537 = vcmp.eq.s32.totalorder %v525, 0
        %vm538 = vcmp.eq.s32.totalorder %v526, 0
        %vm539 = vcmp.eq.s32.totalorder %v527, 0
        %vm540 = vcmp.eq.s32.totalorder %v528, 0
        %vm541 = vcmp.eq.s32.totalorder %v529, 0
        %v543 = vrot.slane %v372, 7
        %vm556 = vcmask 1040384
        %v557 = vrot.slane %v359, 7
        %v558 = vrot.slane %v360, 7
        %v559 = vsel %vm556, %v557, %v558
        %v560 = vrot.slane %v329, 7
        %v561 = vsel %vm556, %v558, %v560
        %v562 = vrot.slane %v330, 7
        %v563 = vsel %vm556, %v560, %v562
        %v564 = vrot.slane %v331, 7
        %v565 = vsel %vm556, %v562, %v564
        %v566 = vrot.slane %v332, 7
        %v567 = vsel %vm556, %v564, %v566
        %v568 = vrot.slane %v333, 7
        %v569 = vsel %vm556, %v566, %v568
        %v570 = vrot.slane %v334, 7
        %v571 = vsel %vm556, %v568, %v570
        %v572 = vrot.slane %v335, 7
        %v573 = vsel %vm556, %v570, %v572
        %v574 = vrot.slane %v336, 7
        %v575 = vsel %vm556, %v572, %v574
        %v576 = vrot.slane %v371, 7
        %v577 = vsel %vm556, %v574, %v576
        %v578 = vsel %vm556, %v576, %v543
        %v591 = vsel %vm556, %v543, %v557
        %v592 = vsel %vm530, 1, 0
        %v593 = vsel %vm531, 1, 0
        %v594 = vsel %vm532, 1, 0
        %v595 = vsel %vm533, 1, 0
        %v596 = vsel %vm534, 1, 0
        %v597 = vsel %vm535, 1, 0
        %v598 = vsel %vm536, 1, 0
        %v599 = vsel %vm537, 1, 0
        %v600 = vsel %vm538, 1, 0
        %v601 = vsel %vm539, 1, 0
        %v602 = vsel %vm540, 1, 0
        %v603 = vsel %vm541, 1, 0
        %vm604 = vcmp.eq.s32.totalorder %v592, 1
        %vm605 = vcmp.eq.s32.totalorder %v593, 1
        %vm606 = vcmp.eq.s32.totalorder %v594, 1
        %vm607 = vcmp.eq.s32.totalorder %v595, 1
        %vm608 = vcmp.eq.s32.totalorder %v596, 1
        %vm609 = vcmp.eq.s32.totalorder %v597, 1
        %vm610 = vcmp.eq.s32.totalorder %v598, 1
        %vm611 = vcmp.eq.s32.totalorder %v599, 1
        %vm612 = vcmp.eq.s32.totalorder %v600, 1
        %vm613 = vcmp.eq.s32.totalorder %v601, 1
        %vm614 = vcmp.eq.s32.totalorder %v602, 1
        %vm615 = vcmp.eq.s32.totalorder %v603, 1
        %v616 = vsel %vm604, 0.0, %v591
        %v617 = vsel %vm605, 0.0, %v559
        %v618 = vsel %vm606, 0.0, %v561
        %v619 = vsel %vm607, 0.0, %v563
        %v620 = vsel %vm608, 0.0, %v565
        %v621 = vsel %vm609, 0.0, %v567
        %v622 = vsel %vm610, 0.0, %v569
        %v623 = vsel %vm611, 0.0, %v571
        %v624 = vsel %vm612, 0.0, %v573
        %v625 = vsel %vm613, 0.0, %v575
        %v626 = vsel %vm614, 0.0, %v577
        %v627 = vsel %vm615, 0.0, %v578
        %vm628 = vcmp.eq.s32.totalorder %v518, 15
        %vm629 = vcmp.eq.s32.totalorder %v519, 15
        %vm630 = vcmp.eq.s32.totalorder %v520, 15
        %vm631 = vcmp.eq.s32.totalorder %v521, 15
        %vm632 = vcmp.eq.s32.totalorder %v522, 15
        %vm633 = vcmp.eq.s32.totalorder %v523, 15
        %vm634 = vcmp.eq.s32.totalorder %v524, 15
        %vm635 = vcmp.eq.s32.totalorder %v525, 15
        %vm636 = vcmp.eq.s32.totalorder %v526, 15
        %vm637 = vcmp.eq.s32.totalorder %v527, 15
        %vm638 = vcmp.eq.s32.totalorder %v528, 15
        %vm639 = vcmp.eq.s32.totalorder %v529, 15
        %vm640 = vcmask 1046528
        %v641 = vrot.slane %v359, 1
        %v642 = vrot.slane %v360, 1
        %v643 = vsel %vm640, %v641, %v642
        %v644 = vrot.slane %v329, 1
        %v645 = vsel %vm640, %v642, %v644
        %v646 = vrot.slane %v330, 1
        %v647 = vsel %vm640, %v644, %v646
        %v648 = vrot.slane %v331, 1
        %v649 = vsel %vm640, %v646, %v648
        %v650 = vrot.slane %v332, 1
        %v651 = vsel %vm640, %v648, %v650
        %v652 = vrot.slane %v333, 1
        %v653 = vsel %vm640, %v650, %v652
        %v654 = vrot.slane %v334, 1
        %v655 = vsel %vm640, %v652, %v654
        %v656 = vrot.slane %v335, 1
        %v657 = vsel %vm640, %v654, %v656
        %v658 = vrot.slane %v336, 1
        %v659 = vsel %vm640, %v656, %v658
        %v660 = vrot.slane %v371, 1
        %v661 = vsel %vm640, %v658, %v660
        %v662 = vrot.slane %v372, 1
        %v663 = vsel %vm640, %v660, %v662
        %v677 = vsel %vm640, %v662, %v641
        %v678 = vsel %vm628, 1, 0
        %v679 = vsel %vm629, 1, 0
        %v680 = vsel %vm630, 1, 0
        %v681 = vsel %vm631, 1, 0
        %v682 = vsel %vm632, 1, 0
        %v683 = vsel %vm633, 1, 0
        %v684 = vsel %vm634, 1, 0
        %v685 = vsel %vm635, 1, 0
        %v686 = vsel %vm636, 1, 0
        %v687 = vsel %vm637, 1, 0
        %v688 = vsel %vm638, 1, 0
        %v689 = vsel %vm639, 1, 0
        %vm690 = vcmp.eq.s32.totalorder %v678, 1
        %vm691 = vcmp.eq.s32.totalorder %v679, 1
        %vm692 = vcmp.eq.s32.totalorder %v680, 1
        %vm693 = vcmp.eq.s32.totalorder %v681, 1
        %vm694 = vcmp.eq.s32.totalorder %v682, 1
        %vm695 = vcmp.eq.s32.totalorder %v683, 1
        %vm696 = vcmp.eq.s32.totalorder %v684, 1
        %vm697 = vcmp.eq.s32.totalorder %v685, 1
        %vm698 = vcmp.eq.s32.totalorder %v686, 1
        %vm699 = vcmp.eq.s32.totalorder %v687, 1
        %vm700 = vcmp.eq.s32.totalorder %v688, 1
        %vm701 = vcmp.eq.s32.totalorder %v689, 1
        %v702 = vsel %vm690, 0.0, %v643
        %v703 = vsel %vm691, 0.0, %v645
        %v704 = vsel %vm692, 0.0, %v647
        %v705 = vsel %vm693, 0.0, %v649
        %v706 = vsel %vm694, 0.0, %v651
        %v707 = vsel %vm695, 0.0, %v653
        %v708 = vsel %vm696, 0.0, %v655
        %v709 = vsel %vm697, 0.0, %v657
        %v710 = vsel %vm698, 0.0, %v659
        %v711 = vsel %vm699, 0.0, %v661
        %v712 = vsel %vm700, 0.0, %v663
        %v713 = vsel %vm701, 0.0, %v677
        %v714 = vpack.c.bf16 %v617, %v616
        %v715 = vpack.c.bf16 %v619, %v618
        %v716 = vpack.c.bf16 %v621, %v620
        %v717 = vpack.c.bf16 %v623, %v622
        %v718 = vpack.c.bf16 %v625, %v624
        %v719 = vpack.c.bf16 %v627, %v626
        %v720 = vpack.c.bf16 %v360, %v359
        %v721 = vpack.c.bf16 %v330, %v329
        %v722 = vpack.c.bf16 %v332, %v331
        %v723 = vpack.c.bf16 %v334, %v333
        %v724 = vpack.c.bf16 %v336, %v335
        %v725 = vpack.c.bf16 %v372, %v371
        %v726 = vpack.c.bf16 %v703, %v702
        %v727 = vpack.c.bf16 %v705, %v704
        %v728 = vpack.c.bf16 %v707, %v706
        %v729 = vpack.c.bf16 %v709, %v708
        %v730 = vpack.c.bf16 %v711, %v710
        %v731 = vpack.c.bf16 %v713, %v712
        %vm732 = vcmask 31744
        %733 = vst.msk [vmem:[#allocation2] sm:$0xff] %vm732, %v714
        %734 = vst.msk [vmem:[#allocation2 + $0x8] sm:$0xff] %vm732, %v715
        %735 = vst.msk [vmem:[#allocation2 + $0x10] sm:$0xff] %vm732, %v716
        %736 = vst.msk [vmem:[#allocation2 + $0x18] sm:$0xff] %vm732, %v717
        %741 = vrot.lane.b32.xlu0 %v720, 4
        %v742 = vpop.permute.xlu0 %741
        %743 = vrot.lane.b32.xlu0 %v721, 4
        %v744 = vpop.permute.xlu0 %743
        %745 = vrot.lane.b32.xlu0 %v722, 4
        %v746 = vpop.permute.xlu0 %745
        %747 = vrot.lane.b32.xlu0 %v723, 4
        %v748 = vpop.permute.xlu0 %747
        %vm753 = vcmask 64544
        %754 = vst.msk [vmem:[#allocation2] sm:$0xff] %vm753, %v742
        %755 = vst.msk [vmem:[#allocation2 + $0x8] sm:$0xff] %vm753, %v744
        %756 = vst.msk [vmem:[#allocation2 + $0x10] sm:$0xff] %vm753, %v746
        %757 = vst.msk [vmem:[#allocation2 + $0x18] sm:$0xff] %vm753, %v748
        %762 = vrot.lane.b32.xlu0 %v726, 8
        %v763 = vpop.permute.xlu0 %762
        %764 = vrot.lane.b32.xlu0 %v727, 8
        %v765 = vpop.permute.xlu0 %764
        %766 = vrot.lane.b32.xlu0 %v728, 8
        %v767 = vpop.permute.xlu0 %766
        %768 = vrot.lane.b32.xlu0 %v729, 8
        %v769 = vpop.permute.xlu0 %768
        %vm774 = vcmask 97344
        %775 = vst.msk [vmem:[#allocation2] sm:$0xff] %vm774, %v763
        %776 = vst.msk [vmem:[#allocation2 + $0x8] sm:$0xff] %vm774, %v765
        %777 = vst.msk [vmem:[#allocation2 + $0x10] sm:$0xff] %vm774, %v767
        %778 = vst.msk [vmem:[#allocation2 + $0x18] sm:$0xff] %vm774, %v769
        %783 = vrot.lane.b32.xlu0 %v715, 12
        %v784 = vpop.permute.xlu0 %783
        %785 = vrot.lane.b32.xlu0 %v716, 12
        %v786 = vpop.permute.xlu0 %785
        %787 = vrot.lane.b32.xlu0 %v717, 12
        %v788 = vpop.permute.xlu0 %787
        %789 = vrot.lane.b32.xlu0 %v718, 12
        %v790 = vpop.permute.xlu0 %789
        %vm795 = vcmask 130144
        %796 = vst.msk [vmem:[#allocation2] sm:$0xff] %vm795, %v784
        %797 = vst.msk [vmem:[#allocation2 + $0x8] sm:$0xff] %vm795, %v786
        %798 = vst.msk [vmem:[#allocation2 + $0x10] sm:$0xff] %vm795, %v788
        %799 = vst.msk [vmem:[#allocation2 + $0x18] sm:$0xff] %vm795, %v790
        %801 = vrot.lane.b32.xlu0 %v721, 16
        %v802 = vpop.permute.xlu0 %801
        %803 = vrot.lane.b32.xlu0 %v722, 16
        %v804 = vpop.permute.xlu0 %803
        %805 = vrot.lane.b32.xlu0 %v723, 16
        %v806 = vpop.permute.xlu0 %805
        %807 = vrot.lane.b32.xlu0 %v724, 16
        %v808 = vpop.permute.xlu0 %807
        %vm813 = vcmask 162944
        %814 = vst.msk [vmem:[#allocation2] sm:$0xff] %vm813, %v802
        %815 = vst.msk [vmem:[#allocation2 + $0x8] sm:$0xff] %vm813, %v804
        %816 = vst.msk [vmem:[#allocation2 + $0x10] sm:$0xff] %vm813, %v806
        %817 = vst.msk [vmem:[#allocation2 + $0x18] sm:$0xff] %vm813, %v808
        %819 = vrot.lane.b32.xlu0 %v727, 20
        %v820 = vpop.permute.xlu0 %819
        %821 = vrot.lane.b32.xlu0 %v728, 20
        %v822 = vpop.permute.xlu0 %821
        %823 = vrot.lane.b32.xlu0 %v729, 20
        %v824 = vpop.permute.xlu0 %823
        %825 = vrot.lane.b32.xlu0 %v730, 20
        %v826 = vpop.permute.xlu0 %825
        %vm831 = vcmask 195744
        %832 = vst.msk [vmem:[#allocation2] sm:$0xff] %vm831, %v820
        %833 = vst.msk [vmem:[#allocation2 + $0x8] sm:$0xff] %vm831, %v822
        %834 = vst.msk [vmem:[#allocation2 + $0x10] sm:$0xff] %vm831, %v824
        %835 = vst.msk [vmem:[#allocation2 + $0x18] sm:$0xff] %vm831, %v826
        %837 = vrot.lane.b32.xlu0 %v716, 24
        %v838 = vpop.permute.xlu0 %837
        %839 = vrot.lane.b32.xlu0 %v717, 24
        %v840 = vpop.permute.xlu0 %839
        %841 = vrot.lane.b32.xlu0 %v718, 24
        %v842 = vpop.permute.xlu0 %841
        %843 = vrot.lane.b32.xlu0 %v719, 24
        %v844 = vpop.permute.xlu0 %843
        %vm849 = vcmask 228544
        %850 = vst.msk [vmem:[#allocation2] sm:$0xff] %vm849, %v838
        %851 = vst.msk [vmem:[#allocation2 + $0x8] sm:$0xff] %vm849, %v840
        %852 = vst.msk [vmem:[#allocation2 + $0x10] sm:$0xff] %vm849, %v842
        %853 = vst.msk [vmem:[#allocation2 + $0x18] sm:$0xff] %vm849, %v844
        %855 = vrot.lane.b32.xlu0 %v722, 28
        %v856 = vpop.permute.xlu0 %855
        %857 = vrot.lane.b32.xlu0 %v723, 28
        %v858 = vpop.permute.xlu0 %857
        %859 = vrot.lane.b32.xlu0 %v724, 28
        %v860 = vpop.permute.xlu0 %859
        %861 = vrot.lane.b32.xlu0 %v725, 28
        %v862 = vpop.permute.xlu0 %861
        %vm867 = vcmask 261344
        %868 = vst.msk [vmem:[#allocation2] sm:$0xff] %vm867, %v856
        %869 = vst.msk [vmem:[#allocation2 + $0x8] sm:$0xff] %vm867, %v858
        %870 = vst.msk [vmem:[#allocation2 + $0x10] sm:$0xff] %vm867, %v860
        %871 = vst.msk [vmem:[#allocation2 + $0x18] sm:$0xff] %vm867, %v862
        %873 = vrot.lane.b32.xlu0 %v728, 32
        %v874 = vpop.permute.xlu0 %873
        %875 = vrot.lane.b32.xlu0 %v729, 32
        %v876 = vpop.permute.xlu0 %875
        %877 = vrot.lane.b32.xlu0 %v730, 32
        %v878 = vpop.permute.xlu0 %877
        %879 = vrot.lane.b32.xlu0 %v731, 32
        %v880 = vpop.permute.xlu0 %879
        %vm885 = vcmask 294144
        %886 = vst.msk [vmem:[#allocation2] sm:$0xff] %vm885, %v874
        %887 = vst.msk [vmem:[#allocation2 + $0x8] sm:$0xff] %vm885, %v876
        %888 = vst.msk [vmem:[#allocation2 + $0x10] sm:$0xff] %vm885, %v878
        %889 = vst.msk [vmem:[#allocation2 + $0x18] sm:$0xff] %vm885, %v880
        %v890 = vld [vmem:[#allocation2] sm:$0xff]
        %v891 = vld [vmem:[#allocation2 + $0x8] sm:$0xff]
        %v892 = vld [vmem:[#allocation2 + $0x10] sm:$0xff]
        %v893 = vld [vmem:[#allocation2 + $0x18] sm:$0xff]
        %v894 = vld [vmem:[%s3] sm:$0xf]
        %v895 = vld [vmem:[%s3 + $0x4] sm:$0xf]
        %v896 = vld [vmem:[%s3 + $0x8] sm:$0xf]
        %v897 = vld [vmem:[%s3 + $0xc] sm:$0xf]
        %v898 = vld [vmem:[%s3 + $0x10] sm:$0x3]
        %v899 = vld [vmem:[%s4] sm:$0x1]
        %v901 = vlaneseq
        %v902 = vshrl.u32 %v901, 7
        %v903 = vsub.s32 0, %v902
        %v904 = vrot.slane %v899, %v903
        %v911 = vunpack.c.l.b16 %v894
        %v912 = vunpack.c.l.b16 %v895
        %v913 = vunpack.c.l.b16 %v896
        %v914 = vunpack.c.l.b16 %v897
        %v915 = vunpack.c.l.b16 %v898
        %v916 = vpack.c.b16 %v912, %v911
        %v917 = vpack.c.b16 %v914, %v913
        %v918 = vpack.c.b16 %v915, %v915
        %vm921 = vcmask 293888
        %v923 = vsel %vm921, %v890, 0
        %v926 = vsel %vm921, %v891, 0
        %v929 = vsel %vm921, %v892, 0
        %v932 = vsel %vm921, %v893, 0
        %vm934 = vcmask 1041408
        %v936 = vsel %vm934, %v918, 0
        %938 = vmatprep.subr.bf16.mxu0 0
        %939 = vmatpush1.bf16.msra.mxu0 %v916
        %940 = vmatprep.subr.bf16.mxu0 0
        %941 = vmatpush1.bf16.msra.mxu0 %v917
        %942 = vmatprep.subr.bf16.mxu0 0
        %943 = vmatpush1.bf16.msra.mxu0 %v936
        %944 = vmatprep.subr.bf16.mxu0 0
        %945 = vmatpush1.bf16.msra.mxu0 0
        %946 = vmatprep.subr.bf16.mxu0 0
        %947 = vmatpush1.bf16.msra.mxu0 0
        %948 = vmatprep.subr.bf16.mxu0 0
        %949 = vmatpush1.bf16.msra.mxu0 0
        %950 = vmatprep.subr.bf16.mxu0 0
        %951 = vmatpush1.bf16.msra.mxu0 0
        %952 = vmatprep.subr.bf16.mxu0 0
        %953 = vmatpush1.bf16.msra.mxu0 0
        %954 = vmatprep.subr.bf16.mxu0 0
        %955 = vmatpush1.bf16.msra.mxu0 0
        %956 = vmatprep.subr.bf16.mxu0 0
        %957 = vmatpush1.bf16.msra.mxu0 0
        %958 = vmatprep.subr.bf16.mxu0 0
        %959 = vmatpush1.bf16.msra.mxu0 0
        %960 = vmatprep.subr.bf16.mxu0 0
        %961 = vmatpush1.bf16.msra.mxu0 0
        %962 = vmatprep.subr.bf16.mxu0 0
        %963 = vmatpush1.bf16.msra.mxu0 0
        %964 = vmatprep.subr.bf16.mxu0 0
        %965 = vmatpush1.bf16.msra.mxu0 0
        %966 = vmatprep.subr.bf16.mxu0 0
        %967 = vmatpush1.bf16.msra.mxu0 0
        %968 = vmatprep.subr.bf16.mxu0 0
        %969 = vmatpush1.bf16.msra.mxu0 0
        %970 = vmatprep.mubr.bf16.mxu0 0
        %971 = vmatmul.mubr.bf16.gmra.mrb[0].mxu0 %v923
        %v972 = vpop.f32.mrb[0].mxu0
        %v973 = vadd.f32 %v904, %v972
        %v974 = vpop.f32.mrb[0].mxu0
        %v975 = vpop.f32.mrb[0].mxu0
        %v976 = vadd.f32 %v904, %v975
        %v977 = vpop.f32.mrb[0].mxu0
        %978 = vmatprep.mubr.bf16.mxu0 0
        %979 = vmatmul.mubr.bf16.gmra.mrb[0].mxu0 %v926
        %v980 = vpop.f32.mrb[0].mxu0
        %v981 = vadd.f32 %v904, %v980
        %v982 = vpop.f32.mrb[0].mxu0
        %v983 = vpop.f32.mrb[0].mxu0
        %v984 = vadd.f32 %v904, %v983
        %v985 = vpop.f32.mrb[0].mxu0
        %986 = vmatprep.mubr.bf16.mxu0 0
        %987 = vmatmul.mubr.bf16.gmra.mrb[0].mxu0 %v929
        %v988 = vpop.f32.mrb[0].mxu0
        %v989 = vadd.f32 %v904, %v988
        %v990 = vpop.f32.mrb[0].mxu0
        %v991 = vpop.f32.mrb[0].mxu0
        %v992 = vadd.f32 %v904, %v991
        %v993 = vpop.f32.mrb[0].mxu0
        %994 = vmatprep.mubr.bf16.mxu0 0
        %995 = vmatmul.mubr.bf16.gmra.mrb[0].mxu0 %v932
        %v996 = vpop.f32.mrb[0].mxu0
        %v997 = vadd.f32 %v904, %v996
        %v998 = vpop.f32.mrb[0].mxu0
        %v999 = vpop.f32.mrb[0].mxu0
        %v1000 = vadd.f32 %v904, %v999
        %v1001 = vpop.f32.mrb[0].mxu0
        %1002 = vdwg.mxu0
        %1003 = vst.msk [vmem:[%s286] sm:$0xff] %vm732, %v973
        %1004 = vst.msk [vmem:[%s286 + $0x8] sm:$0xff] %vm732, %v976
        %1005 = vst.msk [vmem:[%s286 + $0x10] sm:$0xff] %vm732, %v981
        %1006 = vst.msk [vmem:[%s286 + $0x18] sm:$0xff] %vm732, %v984
        %1007 = vst.msk [vmem:[%s286 + $0x20] sm:$0xff] %vm732, %v989
        %1008 = vst.msk [vmem:[%s286 + $0x28] sm:$0xff] %vm732, %v992
        %1009 = vst.msk [vmem:[%s286 + $0x30] sm:$0xff] %vm732, %v997
        %1010 = vst.msk [vmem:[%s286 + $0x38] sm:$0xff] %vm732, %v1000
        %v1011 = vsel %vm732, %v973, 0.0
        %v1012 = vsel %vm732, %v976, 0.0
        %v1013 = vadd.f32 %v1011, %v1012
        %v1014 = vsel %vm732, %v981, 0.0
        %v1015 = vadd.f32 %v1013, %v1014
        %v1016 = vsel %vm732, %v984, 0.0
        %v1017 = vadd.f32 %v1015, %v1016
        %v1018 = vsel %vm732, %v989, 0.0
        %v1019 = vadd.f32 %v1017, %v1018
        %v1020 = vsel %vm732, %v992, 0.0
        %v1021 = vadd.f32 %v1019, %v1020
        %v1022 = vsel %vm732, %v997, 0.0
        %v1023 = vadd.f32 %v1021, %v1022
        %v1024 = vsel %vm732, %v1000, 0.0
        %v1025 = vadd.f32 %v1023, %v1024
        %v1026 = vrot.slane %v1025, 4
        %v1027 = vadd.f32 %v1025, %v1026
        %v1028 = vrot.slane %v1027, 2
        %v1029 = vadd.f32 %v1027, %v1028
        %v1030 = vrot.slane %v1029, 1
        %v1031 = vadd.f32 %v1029, %v1030
        %v1032 = vmul.f32 %v973, %v973
        %v1033 = vmul.f32 %v976, %v976
        %v1034 = vmul.f32 %v981, %v981
        %v1035 = vmul.f32 %v984, %v984
        %v1036 = vmul.f32 %v989, %v989
        %v1037 = vmul.f32 %v992, %v992
        %v1038 = vmul.f32 %v997, %v997
        %v1039 = vmul.f32 %v1000, %v1000
        %v1040 = vsel %vm732, %v1032, 0.0
        %v1041 = vsel %vm732, %v1033, 0.0
        %v1042 = vadd.f32 %v1040, %v1041
        %v1043 = vsel %vm732, %v1034, 0.0
        %v1044 = vadd.f32 %v1042, %v1043
        %v1045 = vsel %vm732, %v1035, 0.0
        %v1046 = vadd.f32 %v1044, %v1045
        %v1047 = vsel %vm732, %v1036, 0.0
        %v1048 = vadd.f32 %v1046, %v1047
        %v1049 = vsel %vm732, %v1037, 0.0
        %v1050 = vadd.f32 %v1048, %v1049
        %v1051 = vsel %vm732, %v1038, 0.0
        %v1052 = vadd.f32 %v1050, %v1051
        %v1053 = vsel %vm732, %v1039, 0.0
        %v1054 = vadd.f32 %v1052, %v1053
        %v1055 = vrot.slane %v1054, 4
        %v1056 = vadd.f32 %v1054, %v1055
        %v1057 = vrot.slane %v1056, 2
        %v1058 = vadd.f32 %v1056, %v1057
        %v1059 = vrot.slane %v1058, 1
        %v1060 = vadd.f32 %v1058, %v1059
        %v1061 = vsel %vm556, %v1031, %v1060
        %vm1062 = vcmask 25600
        %1063 = vst.msk [vmem:[%s272] sm:$0x3] %vm1062, %v1061
        %s1064 = smul.u32 8, %s26
        %p1065 = scmp.lt.s32.totalorder %s25, 1
        %s1066 = scalar_select %p1065, %s25, 1
        %p1067 = scmp.lt.s32.totalorder %s1064, 31
        %s1068 = scalar_select %p1067, %s1064, 31
        %s1069 = smul.addr %s1066, 32
        %s1070 = sadd.s32 %s1068, %s1069
        %s1071 = smul.addr %s1070, 8
        %s1072 = scalar_lea.vmem %s5, %s1071
        %s1073 = sand.u32 %s181, 1
        %s1074 = scalar_lea.sflag [#allocation4], %s1073
        %s1075 = sand.u32 %s181, 1
        %s1076 = smul.addr %s1075, 2
        %s1077 = scalar_lea.vmem [#allocation3], %s1076
        // Predicated region
        $region41: #{tpu_custom_call.1} parent=39 // pred_check
          %p1078 = pneg %p163
        $region42: #{tpu_custom_call.1} parent=39 // pred_check_branch
          %1080 = sbr.rel (%p1078) target = $region44
        $region43: #{tpu_custom_call.1} parent=39 // pred_region
          %s1081 = smul.u32 8, %s26
        $region44: #{tpu_custom_call.1} parent=39 // pred_fallthru
          _
        // Predicated region
        $region45: #{tpu_custom_call.1} parent=39 // pred_check
          %p1082 = pneg %p191
        $region46: #{tpu_custom_call.1} parent=39 // pred_check_branch
          %1084 = sbr.rel (%p1082) target = $region48
        $region47: #{tpu_custom_call.1} parent=39 // pred_region
          %s1086 = ssub.s32 32, 32
          %1087 = vsyncadd %s1074, %s1086
          %s1088 = smul.addr %s25, 4
          %s1089 = sadd.s32 %s26, %s1088
          %s1090 = smul.addr %s1089, 32
          %s1091 = scalar_lea.hbm %s6, %s1090
          %s1093 = sshll.u32 %s1077, 4
          %s1094 = int_to_ptr.vmem [resolvable:$true] %s1093
          %1096 = dma.vmem_to_hbm [thread:$0]  %s1094, 32, %s1091, %s1074
        $region48: #{tpu_custom_call.1} parent=39 // pred_fallthru
          _
      $region40: #{tpu_custom_call.1} parent=5 // pred_fallthru
        _
      %p1097 = scmp.le.s32.totalorder 2, %s16
      // Predicated region
      $region49: #{tpu_custom_call.1} parent=5 // pred_check
        %p1098 = pneg %p1097
      $region50: #{tpu_custom_call.1} parent=5 // pred_check_branch
        %1100 = sbr.rel (%p1098) target = $region52
      $region51: #{tpu_custom_call.1} parent=5 // pred_region
        %s1101 = ssub.s32 %s16, 2
        // Predicated region
        $region53: #{tpu_custom_call.1} parent=51 // pred_check
          %p1102 = pneg %p169
        $region54: #{tpu_custom_call.1} parent=51 // pred_check_branch
          %1104 = sbr.rel (%p1102) target = $region56
        $region55: #{tpu_custom_call.1} parent=51 // pred_region
          %s1105 = smul.u32 8, %s28
          %p1106 = scmp.lt.s32.totalorder %s27, 1
          %s1107 = scalar_select %p1106, %s27, 1
          %p1108 = scmp.lt.s32.totalorder %s1105, 31
          %s1109 = scalar_select %p1108, %s1105, 31
          %s1110 = smul.addr %s1107, 32
          %s1111 = sadd.s32 %s1109, %s1110
          %s1112 = smul.addr %s1111, 8
          %s1113 = scalar_lea.vmem %s5, %s1112
        $region56: #{tpu_custom_call.1} parent=51 // pred_fallthru
          _
        // Predicated region
        $region57: #{tpu_custom_call.1} parent=51 // pred_check
          %p1114 = pneg %p197
        $region58: #{tpu_custom_call.1} parent=51 // pred_check_branch
          %1116 = sbr.rel (%p1114) target = $region60
        $region59: #{tpu_custom_call.1} parent=51 // pred_region
          %s1117 = sand.u32 %s182, 1
          %s1118 = scalar_lea.sflag [#allocation4], %s1117
          %s1119 = sand.u32 %s182, 1
          %s1120 = smul.addr %s1119, 2
          %s1121 = scalar_lea.vmem [#allocation3], %s1120
          %1122 = dma.done %s1118, 32
        $region60: #{tpu_custom_call.1} parent=51 // pred_fallthru
          _
      $region52: #{tpu_custom_call.1} parent=5 // pred_fallthru
        _
    $region6: #{tpu_custom_call.1} parent=1 // loop_footer
      %s20 = sadd.s32 1, %s16
    $region7: #{tpu_custom_call.1} parent=1 // loop_footer_branch
      %15 = sbr.rel target = $region3
    $region8: #{tpu_custom_call.1} parent=1 // loop_exit
      _
    %1123 = vsyncpa [#allocation4], 1
    %s1124 = scalar_lea.sflag [#allocation4], 1
    %1125 = vsyncpa %s1124, 1

</llo_original>
